<compile_context>
chip_gen: v6e
topology: v6e:2x2x1
jax: 0.10.0
libtpu: 0.0.40
codegen_flags: <defaults>
</compile_context>

<pallas_src>
import jax
import jax.numpy as jnp
from jax.experimental import pallas as pl
from jax.experimental.pallas import tpu as pltpu

_EPS = 1e-5
_H1, _H2, _H3 = 128, 256, 128
_HSUM = _H1 + _H2 + _H3
_LANE = 128


def _round_up(n, m):
    return (n + m - 1) // m * m


def qnetwork_kernel(x_ref, w1_ref, w2_ref, w3_ref, w4_ref, vec_ref, out_ref):
    vec = vec_ref[...]                        # (2, 512 + n_pad) f32
    inv_b = jnp.float32(1.0 / x_ref.shape[0])

    def linear_bn_relu(h, w_ref, col0, n):
        g    = vec[0:1, col0:col0 + n]
        beta = vec[1:2, col0:col0 + n]
        # MXU matmul, bf16 inputs, f32 accumulation. The Linear bias is omitted:
        # BN's batch-mean subtraction cancels it exactly.
        hb = jnp.dot(h, w_ref[...], preferred_element_type=jnp.float32)
        # Two INDEPENDENT column reductions (overlap with each other / next layer).
        s1 = jnp.sum(hb, axis=0, keepdims=True)
        s2 = jnp.sum(hb * hb, axis=0, keepdims=True)
        mean = s1 * inv_b
        var = jnp.maximum(s2 * inv_b - mean * mean, 0.0)   # guard tiny cancellation
        scale = g * jax.lax.rsqrt(var + _EPS)              # rsqrt rides the EUP slot
        shift = beta - mean * scale                        # (1,N) vector-only math
        # Single FMA + ReLU pass over (B,N); bf16 cast for the next MXU fused here.
        return jnp.maximum(hb * scale + shift, 0.0).astype(jnp.bfloat16)

    h = x_ref[...]                            # bf16 (batch, state_size)
    h = linear_bn_relu(h, w1_ref, 0, _H1)
    h = linear_bn_relu(h, w2_ref, _H1, _H2)
    h = linear_bn_relu(h, w3_ref, _H1 + _H2, _H3)

    n_pad = out_ref.shape[-1]
    b4 = vec[0:1, _HSUM:_HSUM + n_pad]
    out = jnp.dot(h, w4_ref[...], preferred_element_type=jnp.float32) + b4
    out_ref[...] = out.astype(out_ref.dtype)  # lane-dense (batch, 128) store


def pack_params(params):
    """One-time prep: cast weights to bf16, pad the head to 128 lanes, and pack
    gamma/beta (+ padded final bias) into a single (2, 512+n_pad) f32 slab.
    Hidden-layer Linear biases are intentionally dropped (exact cancellation
    under batch-stat BN)."""
    (w1, b1, g1, be1, w2, b2, g2, be2, w3, b3, g3, be3, w4, b4) = params
    del b1, b2, b3  # cancelled by BN batch-mean subtraction
    action_size = w4.shape[-1]
    n_pad = _round_up(max(action_size, _LANE), _LANE)

    w4p = jnp.zeros((w4.shape[0], n_pad), jnp.float32).at[:, :action_size].set(w4)
    b4p = jnp.zeros((1, n_pad), jnp.float32).at[:, :action_size].set(b4)

    gammas = jnp.concatenate([g1, g2, g3], axis=1)     # (1, 512)
    betas  = jnp.concatenate([be1, be2, be3], axis=1)  # (1, 512)
    slab = jnp.zeros((2, _HSUM + n_pad), jnp.float32)
    slab = slab.at[0:1, :_HSUM].set(gammas)
    slab = slab.at[1:2, :_HSUM].set(betas)
    slab = slab.at[0:1, _HSUM:].set(b4p)

    packed = tuple(w.astype(jnp.bfloat16) for w in (w1, w2, w3, w4p)) + (slab,)
    return packed, action_size


def _nbytes(a):
    return int(a.size) * a.dtype.itemsize


def qnetwork_forward(x, packed, action_size):
    """x: (B, state_size) f32. packed: output of pack_params."""
    w1, w2, w3, w4p, slab = packed
    batch = x.shape[0]
    n_pad = w4p.shape[-1]
    operands = (x.astype(jnp.bfloat16), w1, w2, w3, w4p, slab)
    in_specs = [pl.BlockSpec(op.shape, memory_space=pltpu.MemorySpace.VMEM)
                for op in operands]

    # Size the scoped-VMEM limit explicitly so the 16/32 MiB defaults don't cap
    # the whole-batch single-block path; clamp to 56 MiB so the value stays
    # valid on v7x (64 MiB physical VMEM) as well as v5e/v6e (128 MiB).
    weight_bytes = sum(_nbytes(w) for w in (w1, w2, w3, w4p, slab))
    act_bytes = batch * (2 * _H2 + n_pad) * 4          # widest f32 intermediates
    est = 4 * (weight_bytes + act_bytes + _nbytes(operands[0]) + batch * n_pad * 4)
    vmem_limit = int(min(max(est, 16 * 1024 * 1024), 56 * 1024 * 1024))

    out_pad = pl.pallas_call(
        qnetwork_kernel,
        out_shape=jax.ShapeDtypeStruct((batch, n_pad), jnp.float32),
        in_specs=in_specs,
        out_specs=pl.BlockSpec((batch, n_pad),
                               memory_space=pltpu.MemorySpace.VMEM),
        compiler_params=pltpu.CompilerParams(vmem_limit_bytes=vmem_limit),
    )(*operands)
    return out_pad[:, :action_size]


def init_params(key, state_size, action_size):
    """Deterministic init mimicking PyTorch defaults (uniform +/- 1/sqrt(fan_in));
    BatchNorm gamma=1, beta=0. Returns the flat f32 (PyTorch-semantics) list."""
    dims = [(state_size, _H1), (_H1, _H2), (_H2, _H3), (_H3, action_size)]
    params = []
    keys = jax.random.split(key, len(dims) * 2)
    for i, (fan_in, fan_out) in enumerate(dims):
        bound = 1.0 / jnp.sqrt(jnp.float32(fan_in))
        w = jax.random.uniform(keys[2 * i], (fan_in, fan_out),
                               minval=-bound, maxval=bound, dtype=jnp.float32)
        b = jax.random.uniform(keys[2 * i + 1], (1, fan_out),
                               minval=-bound, maxval=bound, dtype=jnp.float32)
        params.append(w)
        params.append(b)
        if i < 3:  # BatchNorm after the first three Linear layers
            params.append(jnp.ones((1, fan_out), jnp.float32))   # gamma
            params.append(jnp.zeros((1, fan_out), jnp.float32))  # beta
    return params


def reference_forward(x, params, matmul_dtype=jnp.float32):
    """Pure-JAX reference (with biases and centered variance).
    matmul_dtype=f32 == exact PyTorch semantics; matmul_dtype=bf16 mirrors the
    kernel's MXU input casting."""
    (w1, b1, g1, be1, w2, b2, g2, be2, w3, b3, g3, be3, w4, b4) = params

    def dot(a, w):
        return jnp.dot(a.astype(matmul_dtype), w.astype(matmul_dtype),
                       preferred_element_type=jnp.float32)

    def block(h, w, b, g, be):
        h = dot(h, w) + b
        m = jnp.mean(h, axis=0, keepdims=True)
        v = jnp.mean((h - m) ** 2, axis=0, keepdims=True)
        h = (h - m) / jnp.sqrt(v + _EPS) * g + be
        return jnp.maximum(h, 0.0)

    h = block(x, w1, b1, g1, be1)
    h = block(h, w2, b2, g2, be2)
    h = block(h, w3, b3, g3, be3)
    return dot(h, w4) + b4


if __name__ == "__main__":
    state_size = 16
    action_size = 4
    batch = 128   # batch many states per call: fills MXU rows, amortizes launch/DMA cost

    key = jax.random.PRNGKey(0)
    k_x, k_p = jax.random.split(key)
    x = jax.random.normal(k_x, (batch, state_size), dtype=jnp.float32)
    params = init_params(k_p, state_size, action_size)
    packed, act = pack_params(params)

    out = qnetwork_forward(x, packed, act)
    out = jax.block_until_ready(out)
    assert out.shape == (batch, action_size)

    # Tight check against a reference with identical (bf16-matmul) numerics.
    # (Dropping b1/b2/b3 and using E[x^2]-mean^2 perturbs only at f32 rounding level.)
    ref_bf16 = reference_forward(x, params, matmul_dtype=jnp.bfloat16)
    assert jnp.allclose(out, ref_bf16, atol=2e-3, rtol=2e-3)

    # Loose sanity check against exact f32 (PyTorch) semantics.
    ref_f32 = reference_forward(x, params)
    assert jnp.allclose(out, ref_f32, atol=1e-1, rtol=1e-1)

    print("KERNEL_OK")
</pallas_src>

<mosaic_0001>
module attributes {stable_mosaic.version = 11 : i64} {
  func.func @qnetwork_kernel(%arg0: memref<128x16xbf16, #tpu.memory_space<vmem>>, %arg1: memref<16x128xbf16, #tpu.memory_space<vmem>>, %arg2: memref<128x256xbf16, #tpu.memory_space<vmem>>, %arg3: memref<256x128xbf16, #tpu.memory_space<vmem>>, %arg4: memref<128x128xbf16, #tpu.memory_space<vmem>>, %arg5: memref<2x640xf32, #tpu.memory_space<vmem>>, %arg6: memref<128x128xf32, #tpu.memory_space<vmem>>) attributes {dimension_semantics = [], scalar_prefetch = 0 : i64, scratch_operands = 0 : i64, tpu.core_type = #tpu.core_type<tc>} {
    %c0 = arith.constant 0 : index
    %c0_0 = arith.constant 0 : index
    %0 = vector.load %arg5[%c0, %c0_0] : memref<2x640xf32, #tpu.memory_space<vmem>>, vector<2x640xf32>
    %c0_1 = arith.constant 0 : index
    %c0_2 = arith.constant 0 : index
    %1 = vector.load %arg0[%c0_1, %c0_2] : memref<128x16xbf16, #tpu.memory_space<vmem>>, vector<128x16xbf16>
    %2 = vector.extract_strided_slice %0 {offsets = [0, 0], sizes = [1, 128], strides = [1, 1]} : vector<2x640xf32> to vector<1x128xf32>
    %3 = vector.extract_strided_slice %0 {offsets = [1, 0], sizes = [1, 128], strides = [1, 1]} : vector<2x640xf32> to vector<1x128xf32>
    %c0_3 = arith.constant 0 : index
    %c0_4 = arith.constant 0 : index
    %4 = vector.load %arg1[%c0_3, %c0_4] : memref<16x128xbf16, #tpu.memory_space<vmem>>, vector<16x128xbf16>
    %cst = arith.constant dense<0.000000e+00> : vector<128x128xf32>
    %5 = tpu.matmul %1, %4, %cst {dimension_numbers = #tpu.dot_dimension_numbers<[1], [0], [0], [1], [0, 0, 1, 1], [], []>} : vector<128x16xbf16>, vector<16x128xbf16>, vector<128x128xf32> -> vector<128x128xf32>
    %cst_5 = arith.constant dense<0.000000e+00> : vector<128xf32>
    %6 = vector.multi_reduction <add>, %5, %cst_5 [0] : vector<128x128xf32> to vector<128xf32>
    %7 = vector.shape_cast %6 : vector<128xf32> to vector<1x128xf32>
    %8 = arith.mulf %5, %5 : vector<128x128xf32>
    %cst_6 = arith.constant dense<0.000000e+00> : vector<128xf32>
    %9 = vector.multi_reduction <add>, %8, %cst_6 [0] : vector<128x128xf32> to vector<128xf32>
    %10 = vector.shape_cast %9 : vector<128xf32> to vector<1x128xf32>
    %cst_7 = arith.constant 7.812500e-03 : f32
    %11 = vector.broadcast %cst_7 : f32 to vector<1x128xf32>
    %12 = arith.mulf %7, %11 : vector<1x128xf32>
    %cst_8 = arith.constant 7.812500e-03 : f32
    %13 = vector.broadcast %cst_8 : f32 to vector<1x128xf32>
    %14 = arith.mulf %10, %13 : vector<1x128xf32>
    %15 = arith.mulf %12, %12 : vector<1x128xf32>
    %16 = arith.subf %14, %15 : vector<1x128xf32>
    %cst_9 = arith.constant 0.000000e+00 : f32
    %17 = vector.broadcast %cst_9 : f32 to vector<1x128xf32>
    %18 = arith.maximumf %16, %17 : vector<1x128xf32>
    %cst_10 = arith.constant 9.99999974E-6 : f32
    %19 = vector.broadcast %cst_10 : f32 to vector<1x128xf32>
    %20 = arith.addf %18, %19 : vector<1x128xf32>
    %21 = math.rsqrt %20 : vector<1x128xf32>
    %22 = arith.mulf %2, %21 : vector<1x128xf32>
    %23 = arith.mulf %12, %22 : vector<1x128xf32>
    %24 = arith.subf %3, %23 : vector<1x128xf32>
    %25 = vector.broadcast %22 : vector<1x128xf32> to vector<128x128xf32>
    %26 = arith.mulf %5, %25 : vector<128x128xf32>
    %27 = vector.broadcast %24 : vector<1x128xf32> to vector<128x128xf32>
    %28 = arith.addf %26, %27 : vector<128x128xf32>
    %cst_11 = arith.constant 0.000000e+00 : f32
    %29 = vector.broadcast %cst_11 : f32 to vector<128x128xf32>
    %30 = arith.maximumf %28, %29 : vector<128x128xf32>
    %31 = arith.truncf %30 : vector<128x128xf32> to vector<128x128xbf16>
    %32 = vector.extract_strided_slice %0 {offsets = [0, 128], sizes = [1, 256], strides = [1, 1]} : vector<2x640xf32> to vector<1x256xf32>
    %33 = vector.extract_strided_slice %0 {offsets = [1, 128], sizes = [1, 256], strides = [1, 1]} : vector<2x640xf32> to vector<1x256xf32>
    %c0_12 = arith.constant 0 : index
    %c0_13 = arith.constant 0 : index
    %34 = vector.load %arg2[%c0_12, %c0_13] : memref<128x256xbf16, #tpu.memory_space<vmem>>, vector<128x256xbf16>
    %cst_14 = arith.constant dense<0.000000e+00> : vector<128x256xf32>
    %35 = tpu.matmul %31, %34, %cst_14 {dimension_numbers = #tpu.dot_dimension_numbers<[1], [0], [0], [1], [0, 0, 1, 1], [], []>} : vector<128x128xbf16>, vector<128x256xbf16>, vector<128x256xf32> -> vector<128x256xf32>
    %cst_15 = arith.constant dense<0.000000e+00> : vector<256xf32>
    %36 = vector.multi_reduction <add>, %35, %cst_15 [0] : vector<128x256xf32> to vector<256xf32>
    %37 = vector.shape_cast %36 : vector<256xf32> to vector<1x256xf32>
    %38 = arith.mulf %35, %35 : vector<128x256xf32>
    %cst_16 = arith.constant dense<0.000000e+00> : vector<256xf32>
    %39 = vector.multi_reduction <add>, %38, %cst_16 [0] : vector<128x256xf32> to vector<256xf32>
    %40 = vector.shape_cast %39 : vector<256xf32> to vector<1x256xf32>
    %cst_17 = arith.constant 7.812500e-03 : f32
    %41 = vector.broadcast %cst_17 : f32 to vector<1x256xf32>
    %42 = arith.mulf %37, %41 : vector<1x256xf32>
    %cst_18 = arith.constant 7.812500e-03 : f32
    %43 = vector.broadcast %cst_18 : f32 to vector<1x256xf32>
    %44 = arith.mulf %40, %43 : vector<1x256xf32>
    %45 = arith.mulf %42, %42 : vector<1x256xf32>
    %46 = arith.subf %44, %45 : vector<1x256xf32>
    %cst_19 = arith.constant 0.000000e+00 : f32
    %47 = vector.broadcast %cst_19 : f32 to vector<1x256xf32>
    %48 = arith.maximumf %46, %47 : vector<1x256xf32>
    %cst_20 = arith.constant 9.99999974E-6 : f32
    %49 = vector.broadcast %cst_20 : f32 to vector<1x256xf32>
    %50 = arith.addf %48, %49 : vector<1x256xf32>
    %51 = math.rsqrt %50 : vector<1x256xf32>
    %52 = arith.mulf %32, %51 : vector<1x256xf32>
    %53 = arith.mulf %42, %52 : vector<1x256xf32>
    %54 = arith.subf %33, %53 : vector<1x256xf32>
    %55 = vector.broadcast %52 : vector<1x256xf32> to vector<128x256xf32>
    %56 = arith.mulf %35, %55 : vector<128x256xf32>
    %57 = vector.broadcast %54 : vector<1x256xf32> to vector<128x256xf32>
    %58 = arith.addf %56, %57 : vector<128x256xf32>
    %cst_21 = arith.constant 0.000000e+00 : f32
    %59 = vector.broadcast %cst_21 : f32 to vector<128x256xf32>
    %60 = arith.maximumf %58, %59 : vector<128x256xf32>
    %61 = arith.truncf %60 : vector<128x256xf32> to vector<128x256xbf16>
    %62 = vector.extract_strided_slice %0 {offsets = [0, 384], sizes = [1, 128], strides = [1, 1]} : vector<2x640xf32> to vector<1x128xf32>
    %63 = vector.extract_strided_slice %0 {offsets = [1, 384], sizes = [1, 128], strides = [1, 1]} : vector<2x640xf32> to vector<1x128xf32>
    %c0_22 = arith.constant 0 : index
    %c0_23 = arith.constant 0 : index
    %64 = vector.load %arg3[%c0_22, %c0_23] : memref<256x128xbf16, #tpu.memory_space<vmem>>, vector<256x128xbf16>
    %cst_24 = arith.constant dense<0.000000e+00> : vector<128x128xf32>
    %65 = tpu.matmul %61, %64, %cst_24 {dimension_numbers = #tpu.dot_dimension_numbers<[1], [0], [0], [1], [0, 0, 1, 1], [], []>} : vector<128x256xbf16>, vector<256x128xbf16>, vector<128x128xf32> -> vector<128x128xf32>
    %cst_25 = arith.constant dense<0.000000e+00> : vector<128xf32>
    %66 = vector.multi_reduction <add>, %65, %cst_25 [0] : vector<128x128xf32> to vector<128xf32>
    %67 = vector.shape_cast %66 : vector<128xf32> to vector<1x128xf32>
    %68 = arith.mulf %65, %65 : vector<128x128xf32>
    %cst_26 = arith.constant dense<0.000000e+00> : vector<128xf32>
    %69 = vector.multi_reduction <add>, %68, %cst_26 [0] : vector<128x128xf32> to vector<128xf32>
    %70 = vector.shape_cast %69 : vector<128xf32> to vector<1x128xf32>
    %cst_27 = arith.constant 7.812500e-03 : f32
    %71 = vector.broadcast %cst_27 : f32 to vector<1x128xf32>
    %72 = arith.mulf %67, %71 : vector<1x128xf32>
    %cst_28 = arith.constant 7.812500e-03 : f32
    %73 = vector.broadcast %cst_28 : f32 to vector<1x128xf32>
    %74 = arith.mulf %70, %73 : vector<1x128xf32>
    %75 = arith.mulf %72, %72 : vector<1x128xf32>
    %76 = arith.subf %74, %75 : vector<1x128xf32>
    %cst_29 = arith.constant 0.000000e+00 : f32
    %77 = vector.broadcast %cst_29 : f32 to vector<1x128xf32>
    %78 = arith.maximumf %76, %77 : vector<1x128xf32>
    %cst_30 = arith.constant 9.99999974E-6 : f32
    %79 = vector.broadcast %cst_30 : f32 to vector<1x128xf32>
    %80 = arith.addf %78, %79 : vector<1x128xf32>
    %81 = math.rsqrt %80 : vector<1x128xf32>
    %82 = arith.mulf %62, %81 : vector<1x128xf32>
    %83 = arith.mulf %72, %82 : vector<1x128xf32>
    %84 = arith.subf %63, %83 : vector<1x128xf32>
    %85 = vector.broadcast %82 : vector<1x128xf32> to vector<128x128xf32>
    %86 = arith.mulf %65, %85 : vector<128x128xf32>
    %87 = vector.broadcast %84 : vector<1x128xf32> to vector<128x128xf32>
    %88 = arith.addf %86, %87 : vector<128x128xf32>
    %cst_31 = arith.constant 0.000000e+00 : f32
    %89 = vector.broadcast %cst_31 : f32 to vector<128x128xf32>
    %90 = arith.maximumf %88, %89 : vector<128x128xf32>
    %91 = arith.truncf %90 : vector<128x128xf32> to vector<128x128xbf16>
    %92 = vector.extract_strided_slice %0 {offsets = [0, 512], sizes = [1, 128], strides = [1, 1]} : vector<2x640xf32> to vector<1x128xf32>
    %c0_32 = arith.constant 0 : index
    %c0_33 = arith.constant 0 : index
    %93 = vector.load %arg4[%c0_32, %c0_33] : memref<128x128xbf16, #tpu.memory_space<vmem>>, vector<128x128xbf16>
    %cst_34 = arith.constant dense<0.000000e+00> : vector<128x128xf32>
    %94 = tpu.matmul %91, %93, %cst_34 {dimension_numbers = #tpu.dot_dimension_numbers<[1], [0], [0], [1], [0, 0, 1, 1], [], []>} : vector<128x128xbf16>, vector<128x128xbf16>, vector<128x128xf32> -> vector<128x128xf32>
    %95 = vector.broadcast %92 : vector<1x128xf32> to vector<128x128xf32>
    %96 = arith.addf %94, %95 : vector<128x128xf32>
    %c0_35 = arith.constant 0 : index
    %c0_36 = arith.constant 0 : index
    %97 = vector.load %arg6[%c0_35, %c0_36] : memref<128x128xf32, #tpu.memory_space<vmem>>, vector<128x128xf32>
    tpu.vector_store %arg6[%c0_35, %c0_36], %96 {strides = array<i32>} : memref<128x128xf32, #tpu.memory_space<vmem>>, vector<128x128xf32>,
    return
  }
}

</mosaic_0001>

<llo_original>
// kernel: tpu_custom_call.1
$region0: #{tpu_custom_call.1}
  #allocation0 [shape = 'u32[]', space=smem, size = 0x4, offset = 0x4, fixed_abs, tag = 'smem constant byte address 0x4 - core index']
  #allocation1 [shape = 'u32[144,128]{1,0:T(1,128)}', space=vmem, size = 0x12000, scoped, tag = 'internal scratch']
  %s0 = inlined_call_operand.vmem [shape: bf16[128,16], index: 0, kind: input, shape index: {}]
  %s1 = inlined_call_operand.hbm [shape: bf16[16,128], index: 1, kind: input, shape index: {}]
  %s2 = inlined_call_operand.hbm [shape: bf16[128,256], index: 2, kind: input, shape index: {}]
  %s3 = inlined_call_operand.hbm [shape: bf16[256,128], index: 3, kind: input, shape index: {}]
  %s4 = inlined_call_operand.vmem [shape: bf16[128,128], index: 4, kind: input, shape index: {}]
  %s5 = inlined_call_operand.vmem [shape: f32[2,640], index: 5, kind: input, shape index: {}]
  %s6 = inlined_call_operand.hbm [shape: f32[128,128], index: 6, kind: output, shape index: {}]
  %s7 = sld [smem:[#allocation0]]
  $region46: #{tpu_custom_call.1} parent=0
    _
  %s9 = ssub.s32 1, %s7
  %s10 = scalar_select 0, %s9, %s7
  $region1: #{tpu_custom_call.1} parent=0
    #allocation2 [shape = 'u8[4096]{0}', space=vmem, size = 0x1000, scoped, tag = 'input window, operand 1, single buffered']
    #allocation3 [shape = 's32[1]{0}', space=sflag, size = 0x4, scoped, tag = 'scoped memory for tpu_custom_call.1']
    #allocation4 [shape = 's32[1]{0}', space=sflag, size = 0x4, scoped, tag = 'scoped memory for tpu_custom_call.1']
    #allocation5 [shape = 'u8[65536]{0}', space=vmem, size = 0x10000, scoped, tag = 'input window, operand 2, single buffered']
    #allocation6 [shape = 's32[1]{0}', space=sflag, size = 0x4, scoped, tag = 'scoped memory for tpu_custom_call.1']
    #allocation7 [shape = 'u8[65536]{0}', space=vmem, size = 0x10000, scoped, tag = 'input window, operand 3, single buffered']
    #allocation8 [shape = 'u8[65536]{0}', space=vmem, size = 0x10000, scoped, tag = 'output window, operand 0, single buffered']
    %11 = vsyncpa [#allocation3], 0
    %12 = vsyncpa [#allocation6], 0
    %13 = vsyncpa [#allocation4], 0
    // Predicated region
    $region2: #{tpu_custom_call.1} parent=1 // pred_check
      _
    $region3: #{tpu_custom_call.1} parent=1 // pred_check_branch
      %15 = sbr.rel (0) target = $region5
    $region4: #{tpu_custom_call.1} parent=1 // pred_region
      _
    $region5: #{tpu_custom_call.1} parent=1 // pred_fallthru
      _
    // Predicated region
    $region6: #{tpu_custom_call.1} parent=1 // pred_check
      _
    $region7: #{tpu_custom_call.1} parent=1 // pred_check_branch
      %17 = sbr.rel (0) target = $region9
    $region8: #{tpu_custom_call.1} parent=1 // pred_region
      %s19 = ssub.s32 128, 128
      %20 = vsyncadd [#allocation3], %s19
      %s21 = sshll.u32 [#allocation2], 4
      %s22 = int_to_ptr.vmem [resolvable:$true] %s21
      %27 = dma.hbm_to_vmem [thread:$0]  %s1, 128, %s22, [#allocation3], 64, 64, 4
    $region9: #{tpu_custom_call.1} parent=1 // pred_fallthru
      _
    // Predicated region
    $region10: #{tpu_custom_call.1} parent=1 // pred_check
      _
    $region11: #{tpu_custom_call.1} parent=1 // pred_check_branch
      %29 = sbr.rel (0) target = $region13
    $region12: #{tpu_custom_call.1} parent=1 // pred_region
      %s31 = ssub.s32 2048, 2048
      %32 = vsyncadd [#allocation6], %s31
      %s33 = sshll.u32 [#allocation5], 4
      %s34 = int_to_ptr.vmem [resolvable:$true] %s33
      %39 = dma.hbm_to_vmem [thread:$0]  %s2, 2048, %s34, [#allocation6], 128, 128, 8
    $region13: #{tpu_custom_call.1} parent=1 // pred_fallthru
      _
    // Predicated region
    $region14: #{tpu_custom_call.1} parent=1 // pred_check
      _
    $region15: #{tpu_custom_call.1} parent=1 // pred_check_branch
      %41 = sbr.rel (0) target = $region17
    $region16: #{tpu_custom_call.1} parent=1 // pred_region
      %s43 = ssub.s32 2048, 2048
      %44 = vsyncadd [#allocation6], %s43
      %s45 = sshll.u32 [#allocation7], 4
      %s46 = int_to_ptr.vmem [resolvable:$true] %s45
      %51 = dma.hbm_to_vmem [thread:$0]  %s3, 2048, %s46, [#allocation6], 64, 64, 4
    $region17: #{tpu_custom_call.1} parent=1 // pred_fallthru
      _
    // Predicated region
    $region18: #{tpu_custom_call.1} parent=1 // pred_check
      _
    $region19: #{tpu_custom_call.1} parent=1 // pred_check_branch
      %53 = sbr.rel (0) target = $region21
    $region20: #{tpu_custom_call.1} parent=1 // pred_region
      _
    $region21: #{tpu_custom_call.1} parent=1 // pred_fallthru
      _
    // Predicated region
    $region22: #{tpu_custom_call.1} parent=1 // pred_check
      _
    $region23: #{tpu_custom_call.1} parent=1 // pred_check_branch
      %55 = sbr.rel (0) target = $region25
    $region24: #{tpu_custom_call.1} parent=1 // pred_region
      _
    $region25: #{tpu_custom_call.1} parent=1 // pred_fallthru
      _
    // Predicated region
    $region26: #{tpu_custom_call.1} parent=1 // pred_check
      _
    $region27: #{tpu_custom_call.1} parent=1 // pred_check_branch
      %57 = sbr.rel (0) target = $region29
    $region28: #{tpu_custom_call.1} parent=1 // pred_region
      %58 = dma.done [#allocation3], 128
    $region29: #{tpu_custom_call.1} parent=1 // pred_fallthru
      _
    // Predicated region
    $region30: #{tpu_custom_call.1} parent=1 // pred_check
      _
    $region31: #{tpu_custom_call.1} parent=1 // pred_check_branch
      %60 = sbr.rel (0) target = $region33
    $region32: #{tpu_custom_call.1} parent=1 // pred_region
      %61 = dma.done [#allocation6], 2048
    $region33: #{tpu_custom_call.1} parent=1 // pred_fallthru
      _
    // Predicated region
    $region34: #{tpu_custom_call.1} parent=1 // pred_check
      _
    $region35: #{tpu_custom_call.1} parent=1 // pred_check_branch
      %63 = sbr.rel (0) target = $region37
    $region36: #{tpu_custom_call.1} parent=1 // pred_region
      %64 = dma.done [#allocation6], 2048
    $region37: #{tpu_custom_call.1} parent=1 // pred_fallthru
      _
    %v66 = vld [vmem:[%s5] sm:$0xff]
    %v67 = vld [vmem:[%s5 + $0x8] sm:$0x3]
    %v68 = vld [vmem:[%s0] sm:$0xf]
    %v69 = vld [vmem:[%s0 + $0x4] sm:$0xf]
    %v70 = vld [vmem:[%s0 + $0x8] sm:$0xf]
    %v71 = vld [vmem:[%s0 + $0xc] sm:$0xf]
    %v72 = vld [vmem:[%s0 + $0x10] sm:$0xf]
    %v73 = vld [vmem:[%s0 + $0x14] sm:$0xf]
    %v74 = vld [vmem:[%s0 + $0x18] sm:$0xf]
    %v75 = vld [vmem:[%s0 + $0x1c] sm:$0xf]
    %v76 = vld [vmem:[%s0 + $0x20] sm:$0xf]
    %v77 = vld [vmem:[%s0 + $0x24] sm:$0xf]
    %v78 = vld [vmem:[%s0 + $0x28] sm:$0xf]
    %v79 = vld [vmem:[%s0 + $0x2c] sm:$0xf]
    %v80 = vld [vmem:[%s0 + $0x30] sm:$0xf]
    %v81 = vld [vmem:[%s0 + $0x34] sm:$0xf]
    %v82 = vld [vmem:[%s0 + $0x38] sm:$0xf]
    %v83 = vld [vmem:[%s0 + $0x3c] sm:$0xf]
    %v84 = vld [vmem:[#allocation2] sm:$0xf]
    %v85 = vld [vmem:[#allocation2 + $0x4] sm:$0xf]
    %v102 = vunpack.c.l.b16 %v68
    %v103 = vunpack.c.l.b16 %v69
    %v104 = vunpack.c.l.b16 %v70
    %v105 = vunpack.c.l.b16 %v71
    %v106 = vunpack.c.l.b16 %v72
    %v107 = vunpack.c.l.b16 %v73
    %v108 = vunpack.c.l.b16 %v74
    %v109 = vunpack.c.l.b16 %v75
    %v110 = vunpack.c.l.b16 %v76
    %v111 = vunpack.c.l.b16 %v77
    %v112 = vunpack.c.l.b16 %v78
    %v113 = vunpack.c.l.b16 %v79
    %v114 = vunpack.c.l.b16 %v80
    %v115 = vunpack.c.l.b16 %v81
    %v116 = vunpack.c.l.b16 %v82
    %v117 = vunpack.c.l.b16 %v83
    %v118 = vpack.c.b16 %v103, %v102
    %v119 = vpack.c.b16 %v105, %v104
    %v120 = vpack.c.b16 %v107, %v106
    %v121 = vpack.c.b16 %v109, %v108
    %v122 = vpack.c.b16 %v111, %v110
    %v123 = vpack.c.b16 %v113, %v112
    %v124 = vpack.c.b16 %v115, %v114
    %v125 = vpack.c.b16 %v117, %v116
    %v128 = vunpack.c.l.b16 %v84
    %v129 = vunpack.c.l.b16 %v85
    %v130 = vpack.c.b16 %v129, %v128
    %vm132 = vcmask 130048
    %v134 = vsel %vm132, %v118, 0
    %v137 = vsel %vm132, %v119, 0
    %v140 = vsel %vm132, %v120, 0
    %v143 = vsel %vm132, %v121, 0
    %v146 = vsel %vm132, %v122, 0
    %v149 = vsel %vm132, %v123, 0
    %v152 = vsel %vm132, %v124, 0
    %v155 = vsel %vm132, %v125, 0
    %157 = vmatprep.subr.bf16.mxu0 0
    %158 = vmatpush1.bf16.msra.mxu0 0
    %159 = vmatprep.subr.bf16.mxu0 0
    %160 = vmatpush1.bf16.msra.mxu0 0
    %161 = vmatprep.subr.bf16.mxu0 0
    %162 = vmatpush1.bf16.msra.mxu0 0
    %163 = vmatprep.subr.bf16.mxu0 0
    %164 = vmatpush1.bf16.msra.mxu0 0
    %165 = vmatprep.subr.bf16.mxu0 0
    %166 = vmatpush1.bf16.msra.mxu0 0
    %167 = vmatprep.subr.bf16.mxu0 0
    %168 = vmatpush1.bf16.msra.mxu0 0
    %169 = vmatprep.subr.bf16.mxu0 0
    %170 = vmatpush1.bf16.msra.mxu0 0
    %171 = vmatprep.subr.bf16.mxu0 0
    %172 = vmatpush1.bf16.msra.mxu0 %v130
    %173 = vmatprep.subr.bf16.mxu0 0
    %174 = vmatpush2.bf16.msra.mxu0 0
    %175 = vmatprep.subr.bf16.mxu0 0
    %176 = vmatpush2.bf16.msra.mxu0 0
    %177 = vmatprep.subr.bf16.mxu0 0
    %178 = vmatpush2.bf16.msra.mxu0 0
    %179 = vmatprep.subr.bf16.mxu0 0
    %180 = vmatpush2.bf16.msra.mxu0 0
    %181 = vmatprep.subr.bf16.mxu0 0
    %182 = vmatpush2.bf16.msra.mxu0 0
    %183 = vmatprep.subr.bf16.mxu0 0
    %184 = vmatpush2.bf16.msra.mxu0 0
    %185 = vmatprep.subr.bf16.mxu0 0
    %186 = vmatpush2.bf16.msra.mxu0 0
    %187 = vmatprep.subr.bf16.mxu0 0
    %188 = vmatpush2.bf16.msra.mxu0 0
    %189 = vmatprep.mubr.bf16.mxu0 0
    %190 = vmatmul.mubr.bf16.gmra.mxu0 %v134
    %v191 = vpop.f32.mrf.mxu0
    %v192 = vadd.f32 0.0, %v191
    %v193 = vpop.f32.mrf.mxu0
    %v194 = vpop.f32.mrf.mxu0
    %v195 = vadd.f32 0.0, %v194
    %v196 = vpop.f32.mrf.mxu0
    %197 = vmatprep.mubr.bf16.mxu0 0
    %198 = vmatmul.mubr.bf16.gmra.mxu0 %v137
    %v199 = vpop.f32.mrf.mxu0
    %v200 = vadd.f32 0.0, %v199
    %v201 = vpop.f32.mrf.mxu0
    %v202 = vpop.f32.mrf.mxu0
    %v203 = vadd.f32 0.0, %v202
    %v204 = vpop.f32.mrf.mxu0
    %205 = vmatprep.mubr.bf16.mxu0 0
    %206 = vmatmul.mubr.bf16.gmra.mxu0 %v140
    %v207 = vpop.f32.mrf.mxu0
    %v208 = vadd.f32 0.0, %v207
    %v209 = vpop.f32.mrf.mxu0
    %v210 = vpop.f32.mrf.mxu0
    %v211 = vadd.f32 0.0, %v210
    %v212 = vpop.f32.mrf.mxu0
    %213 = vmatprep.mubr.bf16.mxu0 0
    %214 = vmatmul.mubr.bf16.gmra.mxu0 %v143
    %v215 = vpop.f32.mrf.mxu0
    %v216 = vadd.f32 0.0, %v215
    %v217 = vpop.f32.mrf.mxu0
    %v218 = vpop.f32.mrf.mxu0
    %v219 = vadd.f32 0.0, %v218
    %v220 = vpop.f32.mrf.mxu0
    %221 = vmatprep.mubr.bf16.mxu0 0
    %222 = vmatmul.mubr.bf16.gmra.mxu0 %v146
    %v223 = vpop.f32.mrf.mxu0
    %v224 = vadd.f32 0.0, %v223
    %v225 = vpop.f32.mrf.mxu0
    %v226 = vpop.f32.mrf.mxu0
    %v227 = vadd.f32 0.0, %v226
    %v228 = vpop.f32.mrf.mxu0
    %229 = vmatprep.mubr.bf16.mxu0 0
    %230 = vmatmul.mubr.bf16.gmra.mxu0 %v149
    %v231 = vpop.f32.mrf.mxu0
    %v232 = vadd.f32 0.0, %v231
    %v233 = vpop.f32.mrf.mxu0
    %v234 = vpop.f32.mrf.mxu0
    %v235 = vadd.f32 0.0, %v234
    %v236 = vpop.f32.mrf.mxu0
    %237 = vmatprep.mubr.bf16.mxu0 0
    %238 = vmatmul.mubr.bf16.gmra.mxu0 %v152
    %v239 = vpop.f32.mrf.mxu0
    %v240 = vadd.f32 0.0, %v239
    %v241 = vpop.f32.mrf.mxu0
    %v242 = vpop.f32.mrf.mxu0
    %v243 = vadd.f32 0.0, %v242
    %v244 = vpop.f32.mrf.mxu0
    %245 = vmatprep.mubr.bf16.mxu0 0
    %246 = vmatmul.mubr.bf16.gmra.mxu0 %v155
    %v247 = vpop.f32.mrf.mxu0
    %v248 = vadd.f32 0.0, %v247
    %v249 = vpop.f32.mrf.mxu0
    %v250 = vpop.f32.mrf.mxu0
    %v251 = vadd.f32 0.0, %v250
    %v252 = vpop.f32.mrf.mxu0
    %253 = vdwg.mxu0
    %v254 = vadd.f32 %v192, %v195
    %v255 = vadd.f32 %v254, %v200
    %v256 = vadd.f32 %v255, %v203
    %v257 = vadd.f32 %v256, %v208
    %v258 = vadd.f32 %v257, %v211
    %v259 = vadd.f32 %v258, %v216
    %v260 = vadd.f32 %v259, %v219
    %v261 = vadd.f32 %v260, %v224
    %v262 = vadd.f32 %v261, %v227
    %v263 = vadd.f32 %v262, %v232
    %v264 = vadd.f32 %v263, %v235
    %v265 = vadd.f32 %v264, %v240
    %v266 = vadd.f32 %v265, %v243
    %v267 = vadd.f32 %v266, %v248
    %v268 = vadd.f32 %v267, %v251
    %v269 = vrot.slane %v268, 4
    %v270 = vadd.f32 %v268, %v269
    %v271 = vrot.slane %v270, 2
    %v272 = vadd.f32 %v270, %v271
    %v273 = vrot.slane %v272, 1
    %v274 = vadd.f32 %v272, %v273
    %v275 = vmul.f32 %v192, %v192
    %v276 = vmul.f32 %v195, %v195
    %v277 = vmul.f32 %v200, %v200
    %v278 = vmul.f32 %v203, %v203
    %v279 = vmul.f32 %v208, %v208
    %v280 = vmul.f32 %v211, %v211
    %v281 = vmul.f32 %v216, %v216
    %v282 = vmul.f32 %v219, %v219
    %v283 = vmul.f32 %v224, %v224
    %v284 = vmul.f32 %v227, %v227
    %v285 = vmul.f32 %v232, %v232
    %v286 = vmul.f32 %v235, %v235
    %v287 = vmul.f32 %v240, %v240
    %v288 = vmul.f32 %v243, %v243
    %v289 = vmul.f32 %v248, %v248
    %v290 = vmul.f32 %v251, %v251
    %v291 = vadd.f32 %v275, %v276
    %v292 = vadd.f32 %v291, %v277
    %v293 = vadd.f32 %v292, %v278
    %v294 = vadd.f32 %v293, %v279
    %v295 = vadd.f32 %v294, %v280
    %v296 = vadd.f32 %v295, %v281
    %v297 = vadd.f32 %v296, %v282
    %v298 = vadd.f32 %v297, %v283
    %v299 = vadd.f32 %v298, %v284
    %v300 = vadd.f32 %v299, %v285
    %v301 = vadd.f32 %v300, %v286
    %v302 = vadd.f32 %v301, %v287
    %v303 = vadd.f32 %v302, %v288
    %v304 = vadd.f32 %v303, %v289
    %v305 = vadd.f32 %v304, %v290
    %v306 = vrot.slane %v305, 4
    %v307 = vadd.f32 %v305, %v306
    %v308 = vrot.slane %v307, 2
    %v309 = vadd.f32 %v307, %v308
    %v310 = vrot.slane %v309, 1
    %v311 = vadd.f32 %v309, %v310
    %v312 = vmul.f32 %v274, 0.0078125
    %v313 = vmul.f32 %v311, 0.0078125
    %v314 = vmul.f32 %v312, %v312
    %v315 = vsub.f32 %v313, %v314
    %v316 = vmax.f32 %v315, 0.0
    %v317 = vadd.f32 %v316, 1e-05
    %v318 = vrsqrt.pop %v317
    %v319 = vmul.f32 %v66, %v318
    %v320 = vmul.f32 %v312, %v319
    %v323 = vunpack.c.l.s4 1983009808
    %v324 = vunpack.c.0.s8 %v323
    %v325 = vlaneseq
    %v326 = vshrl.u32 %v325, 7
    %v327 = vsub.s32 %v324, %v326
    %v328 = vrot.slane %v320, %v327
    %v329 = vrot.slane %v328, 7
    %v331 = vsub.f32 %v66, %v329
    %v332 = vlaneseq
    %v333 = vshrl.u32 %v332, 7
    %v334 = vsub.s32 0, %v333
    %v335 = vrot.slane %v319, %v334
    %v336 = vmul.f32 %v192, %v335
    %v337 = vmul.f32 %v195, %v335
    %v338 = vmul.f32 %v200, %v335
    %v339 = vmul.f32 %v203, %v335
    %v340 = vmul.f32 %v208, %v335
    %v341 = vmul.f32 %v211, %v335
    %v342 = vmul.f32 %v216, %v335
    %v343 = vmul.f32 %v219, %v335
    %v344 = vmul.f32 %v224, %v335
    %v345 = vmul.f32 %v227, %v335
    %v346 = vmul.f32 %v232, %v335
    %v347 = vmul.f32 %v235, %v335
    %v348 = vmul.f32 %v240, %v335
    %v349 = vmul.f32 %v243, %v335
    %v350 = vmul.f32 %v248, %v335
    %v351 = vmul.f32 %v251, %v335
    %v352 = vlaneseq
    %v353 = vshrl.u32 %v352, 7
    %v354 = vsub.s32 1, %v353
    %v355 = vrot.slane %v331, %v354
    %v356 = vadd.f32 %v336, %v355
    %v357 = vadd.f32 %v337, %v355
    %v358 = vadd.f32 %v338, %v355
    %v359 = vadd.f32 %v339, %v355
    %v360 = vadd.f32 %v340, %v355
    %v361 = vadd.f32 %v341, %v355
    %v362 = vadd.f32 %v342, %v355
    %v363 = vadd.f32 %v343, %v355
    %v364 = vadd.f32 %v344, %v355
    %v365 = vadd.f32 %v345, %v355
    %v366 = vadd.f32 %v346, %v355
    %v367 = vadd.f32 %v347, %v355
    %v368 = vadd.f32 %v348, %v355
    %v369 = vadd.f32 %v349, %v355
    %v370 = vadd.f32 %v350, %v355
    %v371 = vadd.f32 %v351, %v355
    %v372 = vmax.f32 %v356, 0.0
    %v373 = vmax.f32 %v357, 0.0
    %v374 = vmax.f32 %v358, 0.0
    %v375 = vmax.f32 %v359, 0.0
    %v376 = vmax.f32 %v360, 0.0
    %v377 = vmax.f32 %v361, 0.0
    %v378 = vmax.f32 %v362, 0.0
    %v379 = vmax.f32 %v363, 0.0
    %v380 = vmax.f32 %v364, 0.0
    %v381 = vmax.f32 %v365, 0.0
    %v382 = vmax.f32 %v366, 0.0
    %v383 = vmax.f32 %v367, 0.0
    %v384 = vmax.f32 %v368, 0.0
    %v385 = vmax.f32 %v369, 0.0
    %v386 = vmax.f32 %v370, 0.0
    %v387 = vmax.f32 %v371, 0.0
    %v388 = vpack.c.bf16 %v373, %v372
    %v389 = vpack.c.bf16 %v375, %v374
    %v390 = vpack.c.bf16 %v377, %v376
    %v391 = vpack.c.bf16 %v379, %v378
    %v392 = vpack.c.bf16 %v381, %v380
    %v393 = vpack.c.bf16 %v383, %v382
    %v394 = vpack.c.bf16 %v385, %v384
    %v395 = vpack.c.bf16 %v387, %v386
    %v396 = vld [vmem:[#allocation5] sm:$0xff]
    %v397 = vld [vmem:[#allocation5 + $0x8] sm:$0xff]
    %v398 = vld [vmem:[#allocation5 + $0x10] sm:$0xff]
    %v399 = vld [vmem:[#allocation5 + $0x18] sm:$0xff]
    %v400 = vld [vmem:[#allocation5 + $0x20] sm:$0xff]
    %v401 = vld [vmem:[#allocation5 + $0x28] sm:$0xff]
    %v402 = vld [vmem:[#allocation5 + $0x30] sm:$0xff]
    %v403 = vld [vmem:[#allocation5 + $0x38] sm:$0xff]
    %v404 = vld [vmem:[#allocation5 + $0x40] sm:$0xff]
    %v405 = vld [vmem:[#allocation5 + $0x48] sm:$0xff]
    %v406 = vld [vmem:[#allocation5 + $0x50] sm:$0xff]
    %v407 = vld [vmem:[#allocation5 + $0x58] sm:$0xff]
    %v408 = vld [vmem:[#allocation5 + $0x60] sm:$0xff]
    %v409 = vld [vmem:[#allocation5 + $0x68] sm:$0xff]
    %v410 = vld [vmem:[#allocation5 + $0x70] sm:$0xff]
    %v411 = vld [vmem:[#allocation5 + $0x78] sm:$0xff]
    %v428 = vunpack.c.l.b16 %v396
    %v429 = vunpack.c.h.b16 %v396
    %v430 = vunpack.c.l.b16 %v397
    %v431 = vunpack.c.h.b16 %v397
    %v432 = vunpack.c.l.b16 %v398
    %v433 = vunpack.c.h.b16 %v398
    %v434 = vunpack.c.l.b16 %v399
    %v435 = vunpack.c.h.b16 %v399
    %v436 = vunpack.c.l.b16 %v400
    %v437 = vunpack.c.h.b16 %v400
    %v438 = vunpack.c.l.b16 %v401
    %v439 = vunpack.c.h.b16 %v401
    %v440 = vunpack.c.l.b16 %v402
    %v441 = vunpack.c.h.b16 %v402
    %v442 = vunpack.c.l.b16 %v403
    %v443 = vunpack.c.h.b16 %v403
    %v444 = vunpack.c.l.b16 %v404
    %v445 = vunpack.c.h.b16 %v404
    %v446 = vunpack.c.l.b16 %v405
    %v447 = vunpack.c.h.b16 %v405
    %v448 = vunpack.c.l.b16 %v406
    %v449 = vunpack.c.h.b16 %v406
    %v450 = vunpack.c.l.b16 %v407
    %v451 = vunpack.c.h.b16 %v407
    %v452 = vunpack.c.l.b16 %v408
    %v453 = vunpack.c.h.b16 %v408
    %v454 = vunpack.c.l.b16 %v409
    %v455 = vunpack.c.h.b16 %v409
    %v456 = vunpack.c.l.b16 %v410
    %v457 = vunpack.c.h.b16 %v410
    %v458 = vunpack.c.l.b16 %v411
    %v459 = vunpack.c.h.b16 %v411
    %v460 = vpack.c.b16 %v430, %v428
    %v461 = vpack.c.b16 %v431, %v429
    %v462 = vpack.c.b16 %v434, %v432
    %v463 = vpack.c.b16 %v435, %v433
    %v464 = vpack.c.b16 %v438, %v436
    %v465 = vpack.c.b16 %v439, %v437
    %v466 = vpack.c.b16 %v442, %v440
    %v467 = vpack.c.b16 %v443, %v441
    %v468 = vpack.c.b16 %v446, %v444
    %v469 = vpack.c.b16 %v447, %v445
    %v470 = vpack.c.b16 %v450, %v448
    %v471 = vpack.c.b16 %v451, %v449
    %v472 = vpack.c.b16 %v454, %v452
    %v473 = vpack.c.b16 %v455, %v453
    %v474 = vpack.c.b16 %v458, %v456
    %v475 = vpack.c.b16 %v459, %v457
    %492 = vmatprep.subr.bf16.mxu0 %v475
    %493 = vmatpush1.bf16.msra.mxu0 %v474
    %494 = vmatprep.subr.bf16.mxu0 %v473
    %495 = vmatpush1.bf16.msra.mxu0 %v472
    %496 = vmatprep.subr.bf16.mxu0 %v471
    %497 = vmatpush1.bf16.msra.mxu0 %v470
    %498 = vmatprep.subr.bf16.mxu0 %v469
    %499 = vmatpush1.bf16.msra.mxu0 %v468
    %500 = vmatprep.subr.bf16.mxu0 %v467
    %501 = vmatpush1.bf16.msra.mxu0 %v466
    %502 = vmatprep.subr.bf16.mxu0 %v465
    %503 = vmatpush1.bf16.msra.mxu0 %v464
    %504 = vmatprep.subr.bf16.mxu0 %v463
    %505 = vmatpush1.bf16.msra.mxu0 %v462
    %506 = vmatprep.subr.bf16.mxu0 %v461
    %507 = vmatpush1.bf16.msra.mxu0 %v460
    %508 = vmatprep.subr.bf16.mxu0 0
    %509 = vmatpush2.bf16.msra.mxu0 0
    %510 = vmatprep.subr.bf16.mxu0 0
    %511 = vmatpush2.bf16.msra.mxu0 0
    %512 = vmatprep.subr.bf16.mxu0 0
    %513 = vmatpush2.bf16.msra.mxu0 0
    %514 = vmatprep.subr.bf16.mxu0 0
    %515 = vmatpush2.bf16.msra.mxu0 0
    %516 = vmatprep.subr.bf16.mxu0 0
    %517 = vmatpush2.bf16.msra.mxu0 0
    %518 = vmatprep.subr.bf16.mxu0 0
    %519 = vmatpush2.bf16.msra.mxu0 0
    %520 = vmatprep.subr.bf16.mxu0 0
    %521 = vmatpush2.bf16.msra.mxu0 0
    %522 = vmatprep.subr.bf16.mxu0 0
    %523 = vmatpush2.bf16.msra.mxu0 0
    %524 = vmatprep.mubr.bf16.mxu0 0
    %525 = vmatmul.mubr.bf16.gmra.mxu0 %v388
    %v526 = vpop.f32.mrf.mxu0
    %v527 = vadd.f32 0.0, %v526
    %v528 = vpop.f32.mrf.mxu0
    %v529 = vadd.f32 0.0, %v528
    %v530 = vpop.f32.mrf.mxu0
    %v531 = vadd.f32 0.0, %v530
    %v532 = vpop.f32.mrf.mxu0
    %v533 = vadd.f32 0.0, %v532
    %534 = vmatprep.mubr.bf16.mxu0 0
    %535 = vmatmul.mubr.bf16.gmra.mxu0 %v389
    %v536 = vpop.f32.mrf.mxu0
    %v537 = vadd.f32 0.0, %v536
    %v538 = vpop.f32.mrf.mxu0
    %v539 = vadd.f32 0.0, %v538
    %v540 = vpop.f32.mrf.mxu0
    %v541 = vadd.f32 0.0, %v540
    %v542 = vpop.f32.mrf.mxu0
    %v543 = vadd.f32 0.0, %v542
    %544 = vmatprep.mubr.bf16.mxu0 0
    %545 = vmatmul.mubr.bf16.gmra.mxu0 %v390
    %v546 = vpop.f32.mrf.mxu0
    %v547 = vadd.f32 0.0, %v546
    %v548 = vpop.f32.mrf.mxu0
    %v549 = vadd.f32 0.0, %v548
    %v550 = vpop.f32.mrf.mxu0
    %v551 = vadd.f32 0.0, %v550
    %v552 = vpop.f32.mrf.mxu0
    %v553 = vadd.f32 0.0, %v552
    %554 = vmatprep.mubr.bf16.mxu0 0
    %555 = vmatmul.mubr.bf16.gmra.mxu0 %v391
    %v556 = vpop.f32.mrf.mxu0
    %v557 = vadd.f32 0.0, %v556
    %v558 = vpop.f32.mrf.mxu0
    %v559 = vadd.f32 0.0, %v558
    %v560 = vpop.f32.mrf.mxu0
    %v561 = vadd.f32 0.0, %v560
    %v562 = vpop.f32.mrf.mxu0
    %v563 = vadd.f32 0.0, %v562
    %564 = vmatprep.mubr.bf16.mxu0 0
    %565 = vmatmul.mubr.bf16.gmra.mxu0 %v392
    %v566 = vpop.f32.mrf.mxu0
    %v567 = vadd.f32 0.0, %v566
    %v568 = vpop.f32.mrf.mxu0
    %v569 = vadd.f32 0.0, %v568
    %v570 = vpop.f32.mrf.mxu0
    %v571 = vadd.f32 0.0, %v570
    %v572 = vpop.f32.mrf.mxu0
    %v573 = vadd.f32 0.0, %v572
    %574 = vmatprep.mubr.bf16.mxu0 0
    %575 = vmatmul.mubr.bf16.gmra.mxu0 %v393
    %v576 = vpop.f32.mrf.mxu0
    %v577 = vadd.f32 0.0, %v576
    %v578 = vpop.f32.mrf.mxu0
    %v579 = vadd.f32 0.0, %v578
    %v580 = vpop.f32.mrf.mxu0
    %v581 = vadd.f32 0.0, %v580
    %v582 = vpop.f32.mrf.mxu0
    %v583 = vadd.f32 0.0, %v582
    %584 = vmatprep.mubr.bf16.mxu0 0
    %585 = vmatmul.mubr.bf16.gmra.mxu0 %v394
    %v586 = vpop.f32.mrf.mxu0
    %v587 = vadd.f32 0.0, %v586
    %v588 = vpop.f32.mrf.mxu0
    %v589 = vadd.f32 0.0, %v588
    %v590 = vpop.f32.mrf.mxu0
    %v591 = vadd.f32 0.0, %v590
    %v592 = vpop.f32.mrf.mxu0
    %v593 = vadd.f32 0.0, %v592
    %594 = vmatprep.mubr.bf16.mxu0 0
    %595 = vmatmul.mubr.bf16.gmra.mxu0 %v395
    %v596 = vpop.f32.mrf.mxu0
    %v597 = vadd.f32 0.0, %v596
    %v598 = vpop.f32.mrf.mxu0
    %v599 = vadd.f32 0.0, %v598
    %v600 = vpop.f32.mrf.mxu0
    %v601 = vadd.f32 0.0, %v600
    %v602 = vpop.f32.mrf.mxu0
    %v603 = vadd.f32 0.0, %v602
    %604 = vdwg.mxu0
    %v605 = vadd.f32 %v527, %v531
    %v606 = vadd.f32 %v605, %v537
    %v607 = vadd.f32 %v606, %v541
    %v608 = vadd.f32 %v607, %v547
    %v609 = vadd.f32 %v608, %v551
    %v610 = vadd.f32 %v609, %v557
    %v611 = vadd.f32 %v610, %v561
    %v612 = vadd.f32 %v611, %v567
    %v613 = vadd.f32 %v612, %v571
    %v614 = vadd.f32 %v613, %v577
    %v615 = vadd.f32 %v614, %v581
    %v616 = vadd.f32 %v615, %v587
    %v617 = vadd.f32 %v616, %v591
    %v618 = vadd.f32 %v617, %v597
    %v619 = vadd.f32 %v618, %v601
    %v620 = vrot.slane %v619, 4
    %v621 = vadd.f32 %v619, %v620
    %v622 = vrot.slane %v621, 2
    %v623 = vadd.f32 %v621, %v622
    %v624 = vrot.slane %v623, 1
    %v625 = vadd.f32 %v623, %v624
    %v626 = vadd.f32 %v529, %v533
    %v627 = vadd.f32 %v626, %v539
    %v628 = vadd.f32 %v627, %v543
    %v629 = vadd.f32 %v628, %v549
    %v630 = vadd.f32 %v629, %v553
    %v631 = vadd.f32 %v630, %v559
    %v632 = vadd.f32 %v631, %v563
    %v633 = vadd.f32 %v632, %v569
    %v634 = vadd.f32 %v633, %v573
    %v635 = vadd.f32 %v634, %v579
    %v636 = vadd.f32 %v635, %v583
    %v637 = vadd.f32 %v636, %v589
    %v638 = vadd.f32 %v637, %v593
    %v639 = vadd.f32 %v638, %v599
    %v640 = vadd.f32 %v639, %v603
    %v641 = vrot.slane %v640, 4
    %v642 = vadd.f32 %v640, %v641
    %v643 = vrot.slane %v642, 2
    %v644 = vadd.f32 %v642, %v643
    %v645 = vrot.slane %v644, 1
    %v646 = vadd.f32 %v644, %v645
    %v647 = vmul.f32 %v527, %v527
    %v648 = vmul.f32 %v529, %v529
    %v649 = vmul.f32 %v531, %v531
    %v650 = vmul.f32 %v533, %v533
    %v651 = vmul.f32 %v537, %v537
    %v652 = vmul.f32 %v539, %v539
    %v653 = vmul.f32 %v541, %v541
    %v654 = vmul.f32 %v543, %v543
    %v655 = vmul.f32 %v547, %v547
    %v656 = vmul.f32 %v549, %v549
    %v657 = vmul.f32 %v551, %v551
    %v658 = vmul.f32 %v553, %v553
    %v659 = vmul.f32 %v557, %v557
    %v660 = vmul.f32 %v559, %v559
    %v661 = vmul.f32 %v561, %v561
    %v662 = vmul.f32 %v563, %v563
    %v663 = vmul.f32 %v567, %v567
    %v664 = vmul.f32 %v569, %v569
    %v665 = vmul.f32 %v571, %v571
    %v666 = vmul.f32 %v573, %v573
    %v667 = vmul.f32 %v577, %v577
    %v668 = vmul.f32 %v579, %v579
    %v669 = vmul.f32 %v581, %v581
    %v670 = vmul.f32 %v583, %v583
    %v671 = vmul.f32 %v587, %v587
    %v672 = vmul.f32 %v589, %v589
    %v673 = vmul.f32 %v591, %v591
    %v674 = vmul.f32 %v593, %v593
    %v675 = vmul.f32 %v597, %v597
    %v676 = vmul.f32 %v599, %v599
    %v677 = vmul.f32 %v601, %v601
    %v678 = vmul.f32 %v603, %v603
    %v679 = vadd.f32 %v647, %v649
    %v680 = vadd.f32 %v679, %v651
    %v681 = vadd.f32 %v680, %v653
    %v682 = vadd.f32 %v681, %v655
    %v683 = vadd.f32 %v682, %v657
    %v684 = vadd.f32 %v683, %v659
    %v685 = vadd.f32 %v684, %v661
    %v686 = vadd.f32 %v685, %v663
    %v687 = vadd.f32 %v686, %v665
    %v688 = vadd.f32 %v687, %v667
    %v689 = vadd.f32 %v688, %v669
    %v690 = vadd.f32 %v689, %v671
    %v691 = vadd.f32 %v690, %v673
    %v692 = vadd.f32 %v691, %v675
    %v693 = vadd.f32 %v692, %v677
    %v694 = vrot.slane %v693, 4
    %v695 = vadd.f32 %v693, %v694
    %v696 = vrot.slane %v695, 2
    %v697 = vadd.f32 %v695, %v696
    %v698 = vrot.slane %v697, 1
    %v699 = vadd.f32 %v697, %v698
    %v700 = vadd.f32 %v648, %v650
    %v701 = vadd.f32 %v700, %v652
    %v702 = vadd.f32 %v701, %v654
    %v703 = vadd.f32 %v702, %v656
    %v704 = vadd.f32 %v703, %v658
    %v705 = vadd.f32 %v704, %v660
    %v706 = vadd.f32 %v705, %v662
    %v707 = vadd.f32 %v706, %v664
    %v708 = vadd.f32 %v707, %v666
    %v709 = vadd.f32 %v708, %v668
    %v710 = vadd.f32 %v709, %v670
    %v711 = vadd.f32 %v710, %v672
    %v712 = vadd.f32 %v711, %v674
    %v713 = vadd.f32 %v712, %v676
    %v714 = vadd.f32 %v713, %v678
    %v715 = vrot.slane %v714, 4
    %v716 = vadd.f32 %v714, %v715
    %v717 = vrot.slane %v716, 2
    %v718 = vadd.f32 %v716, %v717
    %v719 = vrot.slane %v718, 1
    %v720 = vadd.f32 %v718, %v719
    %v721 = vmul.f32 %v625, 0.0078125
    %v722 = vmul.f32 %v646, 0.0078125
    %v723 = vmul.f32 %v699, 0.0078125
    %v724 = vmul.f32 %v720, 0.0078125
    %v725 = vmul.f32 %v721, %v721
    %v726 = vmul.f32 %v722, %v722
    %v727 = vsub.f32 %v723, %v725
    %v728 = vsub.f32 %v724, %v726
    %v729 = vmax.f32 %v727, 0.0
    %v730 = vmax.f32 %v728, 0.0
    %v731 = vadd.f32 %v729, 1e-05
    %v732 = vadd.f32 %v730, 1e-05
    %v733 = vrsqrt.pop %v731
    %v734 = vrsqrt.pop %v732
    %v736 = vrot.slane %v66, 2
    %v740 = vcombine.low %v733, %v734
    %v742 = vunpack.c.l.s4 1983009808
    %v743 = vunpack.c.0.s8 %v742
    %v744 = vlaneseq
    %v745 = vshrl.u32 %v744, 7
    %v746 = vsub.s32 %v743, %v745
    %v747 = vrot.slane %v740, %v746
    %v749 = vmul.f32 %v736, %v747
    %v751 = vlaneseq
    %v752 = vshrl.u32 %v751, 7
    %v753 = vsub.s32 0, %v752
    %v754 = vrot.slane %v749, %v753
    %v755 = vlaneseq
    %v756 = vshrl.u32 %v755, 7
    %v757 = vsub.s32 2, %v756
    %v758 = vrot.slane %v749, %v757
    %v761 = vmul.f32 %v721, %v754
    %v762 = vmul.f32 %v722, %v758
    %v765 = vcombine.low %v761, %v762
    %v767 = vunpack.c.l.s4 1983009808
    %v768 = vunpack.c.0.s8 %v767
    %v769 = vlaneseq
    %v770 = vshrl.u32 %v769, 7
    %v771 = vsub.s32 %v768, %v770
    %v772 = vrot.slane %v765, %v771
    %v773 = vrot.slane %v772, 7
    %v775 = vsub.f32 %v736, %v773
    %v776 = vlaneseq
    %v777 = vshrl.u32 %v776, 7
    %v778 = vsub.s32 0, %v777
    %v779 = vrot.slane %v754, %v778
    %v780 = vlaneseq
    %v781 = vshrl.u32 %v780, 7
    %v782 = vsub.s32 0, %v781
    %v783 = vrot.slane %v758, %v782
    %v784 = vmul.f32 %v527, %v779
    %v785 = vmul.f32 %v529, %v783
    %v786 = vmul.f32 %v531, %v779
    %v787 = vmul.f32 %v533, %v783
    %v788 = vmul.f32 %v537, %v779
    %v789 = vmul.f32 %v539, %v783
    %v790 = vmul.f32 %v541, %v779
    %v791 = vmul.f32 %v543, %v783
    %v792 = vmul.f32 %v547, %v779
    %v793 = vmul.f32 %v549, %v783
    %v794 = vmul.f32 %v551, %v779
    %v795 = vmul.f32 %v553, %v783
    %v796 = vmul.f32 %v557, %v779
    %v797 = vmul.f32 %v559, %v783
    %v798 = vmul.f32 %v561, %v779
    %v799 = vmul.f32 %v563, %v783
    %v800 = vmul.f32 %v567, %v779
    %v801 = vmul.f32 %v569, %v783
    %v802 = vmul.f32 %v571, %v779
    %v803 = vmul.f32 %v573, %v783
    %v804 = vmul.f32 %v577, %v779
    %v805 = vmul.f32 %v579, %v783
    %v806 = vmul.f32 %v581, %v779
    %v807 = vmul.f32 %v583, %v783
    %v808 = vmul.f32 %v587, %v779
    %v809 = vmul.f32 %v589, %v783
    %v810 = vmul.f32 %v591, %v779
    %v811 = vmul.f32 %v593, %v783
    %v812 = vmul.f32 %v597, %v779
    %v813 = vmul.f32 %v599, %v783
    %v814 = vmul.f32 %v601, %v779
    %v815 = vmul.f32 %v603, %v783
    %v817 = vlaneseq
    %v818 = vshrl.u32 %v817, 7
    %v819 = vsub.s32 1, %v818
    %v820 = vrot.slane %v775, %v819
    %v821 = vlaneseq
    %v822 = vshrl.u32 %v821, 7
    %v823 = vsub.s32 3, %v822
    %v824 = vrot.slane %v775, %v823
    %v827 = vlaneseq
    %v828 = vshrl.u32 %v827, 7
    %v829 = vsub.s32 1, %v828
    %v830 = vrot.slane %v820, %v829
    %v831 = vlaneseq
    %v832 = vshrl.u32 %v831, 7
    %v833 = vsub.s32 1, %v832
    %v834 = vrot.slane %v824, %v833
    %v835 = vadd.f32 %v784, %v830
    %v836 = vadd.f32 %v785, %v834
    %v837 = vadd.f32 %v786, %v830
    %v838 = vadd.f32 %v787, %v834
    %v839 = vadd.f32 %v788, %v830
    %v840 = vadd.f32 %v789, %v834
    %v841 = vadd.f32 %v790, %v830
    %v842 = vadd.f32 %v791, %v834
    %v843 = vadd.f32 %v792, %v830
    %v844 = vadd.f32 %v793, %v834
    %v845 = vadd.f32 %v794, %v830
    %v846 = vadd.f32 %v795, %v834
    %v847 = vadd.f32 %v796, %v830
    %v848 = vadd.f32 %v797, %v834
    %v849 = vadd.f32 %v798, %v830
    %v850 = vadd.f32 %v799, %v834
    %v851 = vadd.f32 %v800, %v830
    %v852 = vadd.f32 %v801, %v834
    %v853 = vadd.f32 %v802, %v830
    %v854 = vadd.f32 %v803, %v834
    %v855 = vadd.f32 %v804, %v830
    %v856 = vadd.f32 %v805, %v834
    %v857 = vadd.f32 %v806, %v830
    %v858 = vadd.f32 %v807, %v834
    %v859 = vadd.f32 %v808, %v830
    %v860 = vadd.f32 %v809, %v834
    %v861 = vadd.f32 %v810, %v830
    %v862 = vadd.f32 %v811, %v834
    %v863 = vadd.f32 %v812, %v830
    %v864 = vadd.f32 %v813, %v834
    %v865 = vadd.f32 %v814, %v830
    %v866 = vadd.f32 %v815, %v834
    %v867 = vmax.f32 %v835, 0.0
    %v868 = vmax.f32 %v836, 0.0
    %v869 = vmax.f32 %v837, 0.0
    %v870 = vmax.f32 %v838, 0.0
    %v871 = vmax.f32 %v839, 0.0
    %v872 = vmax.f32 %v840, 0.0
    %v873 = vmax.f32 %v841, 0.0
    %v874 = vmax.f32 %v842, 0.0
    %v875 = vmax.f32 %v843, 0.0
    %v876 = vmax.f32 %v844, 0.0
    %v877 = vmax.f32 %v845, 0.0
    %v878 = vmax.f32 %v846, 0.0
    %v879 = vmax.f32 %v847, 0.0
    %v880 = vmax.f32 %v848, 0.0
    %v881 = vmax.f32 %v849, 0.0
    %v882 = vmax.f32 %v850, 0.0
    %v883 = vmax.f32 %v851, 0.0
    %v884 = vmax.f32 %v852, 0.0
    %v885 = vmax.f32 %v853, 0.0
    %v886 = vmax.f32 %v854, 0.0
    %v887 = vmax.f32 %v855, 0.0
    %v888 = vmax.f32 %v856, 0.0
    %v889 = vmax.f32 %v857, 0.0
    %v890 = vmax.f32 %v858, 0.0
    %v891 = vmax.f32 %v859, 0.0
    %v892 = vmax.f32 %v860, 0.0
    %v893 = vmax.f32 %v861, 0.0
    %v894 = vmax.f32 %v862, 0.0
    %v895 = vmax.f32 %v863, 0.0
    %v896 = vmax.f32 %v864, 0.0
    %v897 = vmax.f32 %v865, 0.0
    %v898 = vmax.f32 %v866, 0.0
    %v899 = vpack.c.bf16 %v869, %v867
    %v900 = vpack.c.bf16 %v870, %v868
    %v901 = vpack.c.bf16 %v873, %v871
    %v902 = vpack.c.bf16 %v874, %v872
    %v903 = vpack.c.bf16 %v877, %v875
    %v904 = vpack.c.bf16 %v878, %v876
    %v905 = vpack.c.bf16 %v881, %v879
    %v906 = vpack.c.bf16 %v882, %v880
    %v907 = vpack.c.bf16 %v885, %v883
    %v908 = vpack.c.bf16 %v886, %v884
    %v909 = vpack.c.bf16 %v889, %v887
    %v910 = vpack.c.bf16 %v890, %v888
    %v911 = vpack.c.bf16 %v893, %v891
    %v912 = vpack.c.bf16 %v894, %v892
    %v913 = vpack.c.bf16 %v897, %v895
    %v914 = vpack.c.bf16 %v898, %v896
    %v915 = vld [vmem:[#allocation7] sm:$0xf]
    %v916 = vld [vmem:[#allocation7 + $0x4] sm:$0xf]
    %v917 = vld [vmem:[#allocation7 + $0x8] sm:$0xf]
    %v918 = vld [vmem:[#allocation7 + $0xc] sm:$0xf]
    %v919 = vld [vmem:[#allocation7 + $0x10] sm:$0xf]
    %v920 = vld [vmem:[#allocation7 + $0x14] sm:$0xf]
    %v921 = vld [vmem:[#allocation7 + $0x18] sm:$0xf]
    %v922 = vld [vmem:[#allocation7 + $0x1c] sm:$0xf]
    %v923 = vld [vmem:[#allocation7 + $0x20] sm:$0xf]
    %v924 = vld [vmem:[#allocation7 + $0x24] sm:$0xf]
    %v925 = vld [vmem:[#allocation7 + $0x28] sm:$0xf]
    %v926 = vld [vmem:[#allocation7 + $0x2c] sm:$0xf]
    %v927 = vld [vmem:[#allocation7 + $0x30] sm:$0xf]
    %v928 = vld [vmem:[#allocation7 + $0x34] sm:$0xf]
    %v929 = vld [vmem:[#allocation7 + $0x38] sm:$0xf]
    %v930 = vld [vmem:[#allocation7 + $0x3c] sm:$0xf]
    %v931 = vld [vmem:[#allocation7 + $0x40] sm:$0xf]
    %v932 = vld [vmem:[#allocation7 + $0x44] sm:$0xf]
    %v933 = vld [vmem:[#allocation7 + $0x48] sm:$0xf]
    %v934 = vld [vmem:[#allocation7 + $0x4c] sm:$0xf]
    %v935 = vld [vmem:[#allocation7 + $0x50] sm:$0xf]
    %v936 = vld [vmem:[#allocation7 + $0x54] sm:$0xf]
    %v937 = vld [vmem:[#allocation7 + $0x58] sm:$0xf]
    %v938 = vld [vmem:[#allocation7 + $0x5c] sm:$0xf]
    %v939 = vld [vmem:[#allocation7 + $0x60] sm:$0xf]
    %v940 = vld [vmem:[#allocation7 + $0x64] sm:$0xf]
    %v941 = vld [vmem:[#allocation7 + $0x68] sm:$0xf]
    %v942 = vld [vmem:[#allocation7 + $0x6c] sm:$0xf]
    %v943 = vld [vmem:[#allocation7 + $0x70] sm:$0xf]
    %v944 = vld [vmem:[#allocation7 + $0x74] sm:$0xf]
    %v945 = vld [vmem:[#allocation7 + $0x78] sm:$0xf]
    %v946 = vld [vmem:[#allocation7 + $0x7c] sm:$0xf]
    %v979 = vunpack.c.l.b16 %v915
    %v980 = vunpack.c.l.b16 %v916
    %v981 = vunpack.c.l.b16 %v917
    %v982 = vunpack.c.l.b16 %v918
    %v983 = vunpack.c.l.b16 %v919
    %v984 = vunpack.c.l.b16 %v920
    %v985 = vunpack.c.l.b16 %v921
    %v986 = vunpack.c.l.b16 %v922
    %v987 = vunpack.c.l.b16 %v923
    %v988 = vunpack.c.l.b16 %v924
    %v989 = vunpack.c.l.b16 %v925
    %v990 = vunpack.c.l.b16 %v926
    %v991 = vunpack.c.l.b16 %v927
    %v992 = vunpack.c.l.b16 %v928
    %v993 = vunpack.c.l.b16 %v929
    %v994 = vunpack.c.l.b16 %v930
    %v995 = vunpack.c.l.b16 %v931
    %v996 = vunpack.c.l.b16 %v932
    %v997 = vunpack.c.l.b16 %v933
    %v998 = vunpack.c.l.b16 %v934
    %v999 = vunpack.c.l.b16 %v935
    %v1000 = vunpack.c.l.b16 %v936
    %v1001 = vunpack.c.l.b16 %v937
    %v1002 = vunpack.c.l.b16 %v938
    %v1003 = vunpack.c.l.b16 %v939
    %v1004 = vunpack.c.l.b16 %v940
    %v1005 = vunpack.c.l.b16 %v941
    %v1006 = vunpack.c.l.b16 %v942
    %v1007 = vunpack.c.l.b16 %v943
    %v1008 = vunpack.c.l.b16 %v944
    %v1009 = vunpack.c.l.b16 %v945
    %v1010 = vunpack.c.l.b16 %v946
    %v1011 = vpack.c.b16 %v980, %v979
    %v1012 = vpack.c.b16 %v982, %v981
    %v1013 = vpack.c.b16 %v984, %v983
    %v1014 = vpack.c.b16 %v986, %v985
    %v1015 = vpack.c.b16 %v988, %v987
    %v1016 = vpack.c.b16 %v990, %v989
    %v1017 = vpack.c.b16 %v992, %v991
    %v1018 = vpack.c.b16 %v994, %v993
    %v1019 = vpack.c.b16 %v996, %v995
    %v1020 = vpack.c.b16 %v998, %v997
    %v1021 = vpack.c.b16 %v1000, %v999
    %v1022 = vpack.c.b16 %v1002, %v1001
    %v1023 = vpack.c.b16 %v1004, %v1003
    %v1024 = vpack.c.b16 %v1006, %v1005
    %v1025 = vpack.c.b16 %v1008, %v1007
    %v1026 = vpack.c.b16 %v1010, %v1009
    %1043 = vmatprep.subr.bf16.mxu0 0
    %1044 = vmatpush1.bf16.msra.mxu0 %v1018
    %1045 = vmatprep.subr.bf16.mxu0 0
    %1046 = vmatpush1.bf16.msra.mxu0 %v1017
    %1047 = vmatprep.subr.bf16.mxu0 0
    %1048 = vmatpush1.bf16.msra.mxu0 %v1016
    %1049 = vmatprep.subr.bf16.mxu0 0
    %1050 = vmatpush1.bf16.msra.mxu0 %v1015
    %1051 = vmatprep.subr.bf16.mxu0 0
    %1052 = vmatpush1.bf16.msra.mxu0 %v1014
    %1053 = vmatprep.subr.bf16.mxu0 0
    %1054 = vmatpush1.bf16.msra.mxu0 %v1013
    %1055 = vmatprep.subr.bf16.mxu0 0
    %1056 = vmatpush1.bf16.msra.mxu0 %v1012
    %1057 = vmatprep.subr.bf16.mxu0 0
    %1058 = vmatpush1.bf16.msra.mxu0 %v1011
    %1059 = vmatprep.subr.bf16.mxu0 0
    %1060 = vmatpush2.bf16.msra.mxu0 %v1026
    %1061 = vmatprep.subr.bf16.mxu0 0
    %1062 = vmatpush2.bf16.msra.mxu0 %v1025
    %1063 = vmatprep.subr.bf16.mxu0 0
    %1064 = vmatpush2.bf16.msra.mxu0 %v1024
    %1065 = vmatprep.subr.bf16.mxu0 0
    %1066 = vmatpush2.bf16.msra.mxu0 %v1023
    %1067 = vmatprep.subr.bf16.mxu0 0
    %1068 = vmatpush2.bf16.msra.mxu0 %v1022
    %1069 = vmatprep.subr.bf16.mxu0 0
    %1070 = vmatpush2.bf16.msra.mxu0 %v1021
    %1071 = vmatprep.subr.bf16.mxu0 0
    %1072 = vmatpush2.bf16.msra.mxu0 %v1020
    %1073 = vmatprep.subr.bf16.mxu0 0
    %1074 = vmatpush2.bf16.msra.mxu0 %v1019
    %1075 = vmatprep.mubr.bf16.mxu0 %v900
    %1076 = vmatmul.mubr.bf16.gmra.mxu0 %v899
    %v1077 = vpop.f32.mrf.mxu0
    %v1078 = vadd.f32 0.0, %v1077
    %v1079 = vpop.f32.mrf.mxu0
    %v1080 = vpop.f32.mrf.mxu0
    %v1081 = vadd.f32 0.0, %v1080
    %v1082 = vpop.f32.mrf.mxu0
    %1083 = vmatprep.mubr.bf16.mxu0 %v902
    %1084 = vmatmul.mubr.bf16.gmra.mxu0 %v901
    %v1085 = vpop.f32.mrf.mxu0
    %v1086 = vadd.f32 0.0, %v1085
    %v1087 = vpop.f32.mrf.mxu0
    %v1088 = vpop.f32.mrf.mxu0
    %v1089 = vadd.f32 0.0, %v1088
    %v1090 = vpop.f32.mrf.mxu0
    %1091 = vmatprep.mubr.bf16.mxu0 %v904
    %1092 = vmatmul.mubr.bf16.gmra.mxu0 %v903
    %v1093 = vpop.f32.mrf.mxu0
    %v1094 = vadd.f32 0.0, %v1093
    %v1095 = vpop.f32.mrf.mxu0
    %v1096 = vpop.f32.mrf.mxu0
    %v1097 = vadd.f32 0.0, %v1096
    %v1098 = vpop.f32.mrf.mxu0
    %1099 = vmatprep.mubr.bf16.mxu0 %v906
    %1100 = vmatmul.mubr.bf16.gmra.mxu0 %v905
    %v1101 = vpop.f32.mrf.mxu0
    %v1102 = vadd.f32 0.0, %v1101
    %v1103 = vpop.f32.mrf.mxu0
    %v1104 = vpop.f32.mrf.mxu0
    %v1105 = vadd.f32 0.0, %v1104
    %v1106 = vpop.f32.mrf.mxu0
    %1107 = vmatprep.mubr.bf16.mxu0 %v908
    %1108 = vmatmul.mubr.bf16.gmra.mxu0 %v907
    %v1109 = vpop.f32.mrf.mxu0
    %v1110 = vadd.f32 0.0, %v1109
    %v1111 = vpop.f32.mrf.mxu0
    %v1112 = vpop.f32.mrf.mxu0
    %v1113 = vadd.f32 0.0, %v1112
    %v1114 = vpop.f32.mrf.mxu0
    %1115 = vmatprep.mubr.bf16.mxu0 %v910
    %1116 = vmatmul.mubr.bf16.gmra.mxu0 %v909
    %v1117 = vpop.f32.mrf.mxu0
    %v1118 = vadd.f32 0.0, %v1117
    %v1119 = vpop.f32.mrf.mxu0
    %v1120 = vpop.f32.mrf.mxu0
    %v1121 = vadd.f32 0.0, %v1120
    %v1122 = vpop.f32.mrf.mxu0
    %1123 = vmatprep.mubr.bf16.mxu0 %v912
    %1124 = vmatmul.mubr.bf16.gmra.mxu0 %v911
    %v1125 = vpop.f32.mrf.mxu0
    %v1126 = vadd.f32 0.0, %v1125
    %v1127 = vpop.f32.mrf.mxu0
    %v1128 = vpop.f32.mrf.mxu0
    %v1129 = vadd.f32 0.0, %v1128
    %v1130 = vpop.f32.mrf.mxu0
    %1131 = vmatprep.mubr.bf16.mxu0 %v914
    %1132 = vmatmul.mubr.bf16.gmra.mxu0 %v913
    %v1133 = vpop.f32.mrf.mxu0
    %v1134 = vadd.f32 0.0, %v1133
    %v1135 = vpop.f32.mrf.mxu0
    %v1136 = vpop.f32.mrf.mxu0
    %v1137 = vadd.f32 0.0, %v1136
    %v1138 = vpop.f32.mrf.mxu0
    %1139 = vdwg.mxu0
    %v1140 = vadd.f32 %v1078, %v1081
    %v1141 = vadd.f32 %v1140, %v1086
    %v1142 = vadd.f32 %v1141, %v1089
    %v1143 = vadd.f32 %v1142, %v1094
    %v1144 = vadd.f32 %v1143, %v1097
    %v1145 = vadd.f32 %v1144, %v1102
    %v1146 = vadd.f32 %v1145, %v1105
    %v1147 = vadd.f32 %v1146, %v1110
    %v1148 = vadd.f32 %v1147, %v1113
    %v1149 = vadd.f32 %v1148, %v1118
    %v1150 = vadd.f32 %v1149, %v1121
    %v1151 = vadd.f32 %v1150, %v1126
    %v1152 = vadd.f32 %v1151, %v1129
    %v1153 = vadd.f32 %v1152, %v1134
    %v1154 = vadd.f32 %v1153, %v1137
    %v1155 = vrot.slane %v1154, 4
    %v1156 = vadd.f32 %v1154, %v1155
    %v1157 = vrot.slane %v1156, 2
    %v1158 = vadd.f32 %v1156, %v1157
    %v1159 = vrot.slane %v1158, 1
    %v1160 = vadd.f32 %v1158, %v1159
    %v1161 = vmul.f32 %v1078, %v1078
    %v1162 = vmul.f32 %v1081, %v1081
    %v1163 = vmul.f32 %v1086, %v1086
    %v1164 = vmul.f32 %v1089, %v1089
    %v1165 = vmul.f32 %v1094, %v1094
    %v1166 = vmul.f32 %v1097, %v1097
    %v1167 = vmul.f32 %v1102, %v1102
    %v1168 = vmul.f32 %v1105, %v1105
    %v1169 = vmul.f32 %v1110, %v1110
    %v1170 = vmul.f32 %v1113, %v1113
    %v1171 = vmul.f32 %v1118, %v1118
    %v1172 = vmul.f32 %v1121, %v1121
    %v1173 = vmul.f32 %v1126, %v1126
    %v1174 = vmul.f32 %v1129, %v1129
    %v1175 = vmul.f32 %v1134, %v1134
    %v1176 = vmul.f32 %v1137, %v1137
    %v1177 = vadd.f32 %v1161, %v1162
    %v1178 = vadd.f32 %v1177, %v1163
    %v1179 = vadd.f32 %v1178, %v1164
    %v1180 = vadd.f32 %v1179, %v1165
    %v1181 = vadd.f32 %v1180, %v1166
    %v1182 = vadd.f32 %v1181, %v1167
    %v1183 = vadd.f32 %v1182, %v1168
    %v1184 = vadd.f32 %v1183, %v1169
    %v1185 = vadd.f32 %v1184, %v1170
    %v1186 = vadd.f32 %v1185, %v1171
    %v1187 = vadd.f32 %v1186, %v1172
    %v1188 = vadd.f32 %v1187, %v1173
    %v1189 = vadd.f32 %v1188, %v1174
    %v1190 = vadd.f32 %v1189, %v1175
    %v1191 = vadd.f32 %v1190, %v1176
    %v1192 = vrot.slane %v1191, 4
    %v1193 = vadd.f32 %v1191, %v1192
    %v1194 = vrot.slane %v1193, 2
    %v1195 = vadd.f32 %v1193, %v1194
    %v1196 = vrot.slane %v1195, 1
    %v1197 = vadd.f32 %v1195, %v1196
    %v1198 = vmul.f32 %v1160, 0.0078125
    %v1199 = vmul.f32 %v1197, 0.0078125
    %v1200 = vmul.f32 %v1198, %v1198
    %v1201 = vsub.f32 %v1199, %v1200
    %v1202 = vmax.f32 %v1201, 0.0
    %v1203 = vadd.f32 %v1202, 1e-05
    %v1204 = vrsqrt.pop %v1203
    %v1205 = vrot.slane %v66, 6
    %v1207 = vmul.f32 %v1205, %v1204
    %v1208 = vmul.f32 %v1198, %v1207
    %v1211 = vunpack.c.l.s4 1983009808
    %v1212 = vunpack.c.0.s8 %v1211
    %v1213 = vlaneseq
    %v1214 = vshrl.u32 %v1213, 7
    %v1215 = vsub.s32 %v1212, %v1214
    %v1216 = vrot.slane %v1208, %v1215
    %v1217 = vrot.slane %v1216, 7
    %v1219 = vsub.f32 %v1205, %v1217
    %v1220 = vlaneseq
    %v1221 = vshrl.u32 %v1220, 7
    %v1222 = vsub.s32 0, %v1221
    %v1223 = vrot.slane %v1207, %v1222
    %v1224 = vmul.f32 %v1078, %v1223
    %v1225 = vmul.f32 %v1081, %v1223
    %v1226 = vmul.f32 %v1086, %v1223
    %v1227 = vmul.f32 %v1089, %v1223
    %v1228 = vmul.f32 %v1094, %v1223
    %v1229 = vmul.f32 %v1097, %v1223
    %v1230 = vmul.f32 %v1102, %v1223
    %v1231 = vmul.f32 %v1105, %v1223
    %v1232 = vmul.f32 %v1110, %v1223
    %v1233 = vmul.f32 %v1113, %v1223
    %v1234 = vmul.f32 %v1118, %v1223
    %v1235 = vmul.f32 %v1121, %v1223
    %v1236 = vmul.f32 %v1126, %v1223
    %v1237 = vmul.f32 %v1129, %v1223
    %v1238 = vmul.f32 %v1134, %v1223
    %v1239 = vmul.f32 %v1137, %v1223
    %v1240 = vlaneseq
    %v1241 = vshrl.u32 %v1240, 7
    %v1242 = vsub.s32 1, %v1241
    %v1243 = vrot.slane %v1219, %v1242
    %v1244 = vadd.f32 %v1224, %v1243
    %v1245 = vadd.f32 %v1225, %v1243
    %v1246 = vadd.f32 %v1226, %v1243
    %v1247 = vadd.f32 %v1227, %v1243
    %v1248 = vadd.f32 %v1228, %v1243
    %v1249 = vadd.f32 %v1229, %v1243
    %v1250 = vadd.f32 %v1230, %v1243
    %v1251 = vadd.f32 %v1231, %v1243
    %v1252 = vadd.f32 %v1232, %v1243
    %v1253 = vadd.f32 %v1233, %v1243
    %v1254 = vadd.f32 %v1234, %v1243
    %v1255 = vadd.f32 %v1235, %v1243
    %v1256 = vadd.f32 %v1236, %v1243
    %v1257 = vadd.f32 %v1237, %v1243
    %v1258 = vadd.f32 %v1238, %v1243
    %v1259 = vadd.f32 %v1239, %v1243
    %v1260 = vmax.f32 %v1244, 0.0
    %v1261 = vmax.f32 %v1245, 0.0
    %v1262 = vmax.f32 %v1246, 0.0
    %v1263 = vmax.f32 %v1247, 0.0
    %v1264 = vmax.f32 %v1248, 0.0
    %v1265 = vmax.f32 %v1249, 0.0
    %v1266 = vmax.f32 %v1250, 0.0
    %v1267 = vmax.f32 %v1251, 0.0
    %v1268 = vmax.f32 %v1252, 0.0
    %v1269 = vmax.f32 %v1253, 0.0
    %v1270 = vmax.f32 %v1254, 0.0
    %v1271 = vmax.f32 %v1255, 0.0
    %v1272 = vmax.f32 %v1256, 0.0
    %v1273 = vmax.f32 %v1257, 0.0
    %v1274 = vmax.f32 %v1258, 0.0
    %v1275 = vmax.f32 %v1259, 0.0
    %v1276 = vpack.c.bf16 %v1261, %v1260
    %v1277 = vpack.c.bf16 %v1263, %v1262
    %v1278 = vpack.c.bf16 %v1265, %v1264
    %v1279 = vpack.c.bf16 %v1267, %v1266
    %v1280 = vpack.c.bf16 %v1269, %v1268
    %v1281 = vpack.c.bf16 %v1271, %v1270
    %v1282 = vpack.c.bf16 %v1273, %v1272
    %v1283 = vpack.c.bf16 %v1275, %v1274
    %v1284 = vld [vmem:[%s4] sm:$0xf]
    %v1285 = vld [vmem:[%s4 + $0x4] sm:$0xf]
    %v1286 = vld [vmem:[%s4 + $0x8] sm:$0xf]
    %v1287 = vld [vmem:[%s4 + $0xc] sm:$0xf]
    %v1288 = vld [vmem:[%s4 + $0x10] sm:$0xf]
    %v1289 = vld [vmem:[%s4 + $0x14] sm:$0xf]
    %v1290 = vld [vmem:[%s4 + $0x18] sm:$0xf]
    %v1291 = vld [vmem:[%s4 + $0x1c] sm:$0xf]
    %v1292 = vld [vmem:[%s4 + $0x20] sm:$0xf]
    %v1293 = vld [vmem:[%s4 + $0x24] sm:$0xf]
    %v1294 = vld [vmem:[%s4 + $0x28] sm:$0xf]
    %v1295 = vld [vmem:[%s4 + $0x2c] sm:$0xf]
    %v1296 = vld [vmem:[%s4 + $0x30] sm:$0xf]
    %v1297 = vld [vmem:[%s4 + $0x34] sm:$0xf]
    %v1298 = vld [vmem:[%s4 + $0x38] sm:$0xf]
    %v1299 = vld [vmem:[%s4 + $0x3c] sm:$0xf]
    %v1300 = vlaneseq
    %v1301 = vshrl.u32 %v1300, 7
    %v1302 = vsub.s32 0, %v1301
    %v1303 = vrot.slane %v67, %v1302
    %v1320 = vunpack.c.l.b16 %v1284
    %v1321 = vunpack.c.l.b16 %v1285
    %v1322 = vunpack.c.l.b16 %v1286
    %v1323 = vunpack.c.l.b16 %v1287
    %v1324 = vunpack.c.l.b16 %v1288
    %v1325 = vunpack.c.l.b16 %v1289
    %v1326 = vunpack.c.l.b16 %v1290
    %v1327 = vunpack.c.l.b16 %v1291
    %v1328 = vunpack.c.l.b16 %v1292
    %v1329 = vunpack.c.l.b16 %v1293
    %v1330 = vunpack.c.l.b16 %v1294
    %v1331 = vunpack.c.l.b16 %v1295
    %v1332 = vunpack.c.l.b16 %v1296
    %v1333 = vunpack.c.l.b16 %v1297
    %v1334 = vunpack.c.l.b16 %v1298
    %v1335 = vunpack.c.l.b16 %v1299
    %v1336 = vpack.c.b16 %v1321, %v1320
    %v1337 = vpack.c.b16 %v1323, %v1322
    %v1338 = vpack.c.b16 %v1325, %v1324
    %v1339 = vpack.c.b16 %v1327, %v1326
    %v1340 = vpack.c.b16 %v1329, %v1328
    %v1341 = vpack.c.b16 %v1331, %v1330
    %v1342 = vpack.c.b16 %v1333, %v1332
    %v1343 = vpack.c.b16 %v1335, %v1334
    %1352 = vmatprep.subr.bf16.mxu0 0
    %1353 = vmatpush1.bf16.msra.mxu0 %v1343
    %1354 = vmatprep.subr.bf16.mxu0 0
    %1355 = vmatpush1.bf16.msra.mxu0 %v1342
    %1356 = vmatprep.subr.bf16.mxu0 0
    %1357 = vmatpush1.bf16.msra.mxu0 %v1341
    %1358 = vmatprep.subr.bf16.mxu0 0
    %1359 = vmatpush1.bf16.msra.mxu0 %v1340
    %1360 = vmatprep.subr.bf16.mxu0 0
    %1361 = vmatpush1.bf16.msra.mxu0 %v1339
    %1362 = vmatprep.subr.bf16.mxu0 0
    %1363 = vmatpush1.bf16.msra.mxu0 %v1338
    %1364 = vmatprep.subr.bf16.mxu0 0
    %1365 = vmatpush1.bf16.msra.mxu0 %v1337
    %1366 = vmatprep.subr.bf16.mxu0 0
    %1367 = vmatpush1.bf16.msra.mxu0 %v1336
    %1368 = vmatprep.subr.bf16.mxu0 0
    %1369 = vmatpush2.bf16.msra.mxu0 0
    %1370 = vmatprep.subr.bf16.mxu0 0
    %1371 = vmatpush2.bf16.msra.mxu0 0
    %1372 = vmatprep.subr.bf16.mxu0 0
    %1373 = vmatpush2.bf16.msra.mxu0 0
    %1374 = vmatprep.subr.bf16.mxu0 0
    %1375 = vmatpush2.bf16.msra.mxu0 0
    %1376 = vmatprep.subr.bf16.mxu0 0
    %1377 = vmatpush2.bf16.msra.mxu0 0
    %1378 = vmatprep.subr.bf16.mxu0 0
    %1379 = vmatpush2.bf16.msra.mxu0 0
    %1380 = vmatprep.subr.bf16.mxu0 0
    %1381 = vmatpush2.bf16.msra.mxu0 0
    %1382 = vmatprep.subr.bf16.mxu0 0
    %1383 = vmatpush2.bf16.msra.mxu0 0
    %1384 = vmatprep.mubr.bf16.mxu0 0
    %1385 = vmatmul.mubr.bf16.gmra.mxu0 %v1276
    %v1386 = vpop.f32.mrf.mxu0
    %v1387 = vadd.f32 %v1303, %v1386
    %v1388 = vpop.f32.mrf.mxu0
    %v1389 = vpop.f32.mrf.mxu0
    %v1390 = vadd.f32 %v1303, %v1389
    %v1391 = vpop.f32.mrf.mxu0
    %1392 = vmatprep.mubr.bf16.mxu0 0
    %1393 = vmatmul.mubr.bf16.gmra.mxu0 %v1277
    %v1394 = vpop.f32.mrf.mxu0
    %v1395 = vadd.f32 %v1303, %v1394
    %v1396 = vpop.f32.mrf.mxu0
    %v1397 = vpop.f32.mrf.mxu0
    %v1398 = vadd.f32 %v1303, %v1397
    %v1399 = vpop.f32.mrf.mxu0
    %1400 = vmatprep.mubr.bf16.mxu0 0
    %1401 = vmatmul.mubr.bf16.gmra.mxu0 %v1278
    %v1402 = vpop.f32.mrf.mxu0
    %v1403 = vadd.f32 %v1303, %v1402
    %v1404 = vpop.f32.mrf.mxu0
    %v1405 = vpop.f32.mrf.mxu0
    %v1406 = vadd.f32 %v1303, %v1405
    %v1407 = vpop.f32.mrf.mxu0
    %1408 = vmatprep.mubr.bf16.mxu0 0
    %1409 = vmatmul.mubr.bf16.gmra.mxu0 %v1279
    %v1410 = vpop.f32.mrf.mxu0
    %v1411 = vadd.f32 %v1303, %v1410
    %v1412 = vpop.f32.mrf.mxu0
    %v1413 = vpop.f32.mrf.mxu0
    %v1414 = vadd.f32 %v1303, %v1413
    %v1415 = vpop.f32.mrf.mxu0
    %1416 = vmatprep.mubr.bf16.mxu0 0
    %1417 = vmatmul.mubr.bf16.gmra.mxu0 %v1280
    %v1418 = vpop.f32.mrf.mxu0
    %v1419 = vadd.f32 %v1303, %v1418
    %v1420 = vpop.f32.mrf.mxu0
    %v1421 = vpop.f32.mrf.mxu0
    %v1422 = vadd.f32 %v1303, %v1421
    %v1423 = vpop.f32.mrf.mxu0
    %1424 = vmatprep.mubr.bf16.mxu0 0
    %1425 = vmatmul.mubr.bf16.gmra.mxu0 %v1281
    %v1426 = vpop.f32.mrf.mxu0
    %v1427 = vadd.f32 %v1303, %v1426
    %v1428 = vpop.f32.mrf.mxu0
    %v1429 = vpop.f32.mrf.mxu0
    %v1430 = vadd.f32 %v1303, %v1429
    %v1431 = vpop.f32.mrf.mxu0
    %1432 = vmatprep.mubr.bf16.mxu0 0
    %1433 = vmatmul.mubr.bf16.gmra.mxu0 %v1282
    %v1434 = vpop.f32.mrf.mxu0
    %v1435 = vadd.f32 %v1303, %v1434
    %v1436 = vpop.f32.mrf.mxu0
    %v1437 = vpop.f32.mrf.mxu0
    %v1438 = vadd.f32 %v1303, %v1437
    %v1439 = vpop.f32.mrf.mxu0
    %1440 = vmatprep.mubr.bf16.mxu0 0
    %1441 = vmatmul.mubr.bf16.gmra.mxu0 %v1283
    %v1442 = vpop.f32.mrf.mxu0
    %v1443 = vadd.f32 %v1303, %v1442
    %v1444 = vpop.f32.mrf.mxu0
    %v1445 = vpop.f32.mrf.mxu0
    %v1446 = vadd.f32 %v1303, %v1445
    %v1447 = vpop.f32.mrf.mxu0
    %1448 = vdwg.mxu0
    %1449 = vst [vmem:[#allocation8] sm:$0xff] %v1387
    %1450 = vst [vmem:[#allocation8 + $0x8] sm:$0xff] %v1390
    %1451 = vst [vmem:[#allocation8 + $0x10] sm:$0xff] %v1395
    %1452 = vst [vmem:[#allocation8 + $0x18] sm:$0xff] %v1398
    %1453 = vst [vmem:[#allocation8 + $0x20] sm:$0xff] %v1403
    %1454 = vst [vmem:[#allocation8 + $0x28] sm:$0xff] %v1406
    %1455 = vst [vmem:[#allocation8 + $0x30] sm:$0xff] %v1411
    %1456 = vst [vmem:[#allocation8 + $0x38] sm:$0xff] %v1414
    %1457 = vst [vmem:[#allocation8 + $0x40] sm:$0xff] %v1419
    %1458 = vst [vmem:[#allocation8 + $0x48] sm:$0xff] %v1422
    %1459 = vst [vmem:[#allocation8 + $0x50] sm:$0xff] %v1427
    %1460 = vst [vmem:[#allocation8 + $0x58] sm:$0xff] %v1430
    %1461 = vst [vmem:[#allocation8 + $0x60] sm:$0xff] %v1435
    %1462 = vst [vmem:[#allocation8 + $0x68] sm:$0xff] %v1438
    %1463 = vst [vmem:[#allocation8 + $0x70] sm:$0xff] %v1443
    %1464 = vst [vmem:[#allocation8 + $0x78] sm:$0xff] %v1446
    // Predicated region
    $region38: #{tpu_custom_call.1} parent=1 // pred_check
      _
    $region39: #{tpu_custom_call.1} parent=1 // pred_check_branch
      %1466 = sbr.rel (0) target = $region41
    $region40: #{tpu_custom_call.1} parent=1 // pred_region
      %s1468 = ssub.s32 2048, 2048
      %1469 = vsyncadd [#allocation4], %s1468
      %s1470 = sshll.u32 [#allocation8], 4
      %s1471 = int_to_ptr.vmem [resolvable:$true] %s1470
      %1476 = dma.vmem_to_hbm [thread:$0]  %s1471, 2048, %s6, [#allocation4], 128, 128, 8
    $region41: #{tpu_custom_call.1} parent=1 // pred_fallthru
      _
    // Predicated region
    $region42: #{tpu_custom_call.1} parent=1 // pred_check
      _
    $region43: #{tpu_custom_call.1} parent=1 // pred_check_branch
      %1478 = sbr.rel (0) target = $region45
    $region44: #{tpu_custom_call.1} parent=1 // pred_region
      %1479 = dma.done [#allocation4], 2048
    $region45: #{tpu_custom_call.1} parent=1 // pred_fallthru
      _
    %1480 = vsyncpa [#allocation3], 1
    %1481 = vsyncpa [#allocation6], 1
    %1482 = vsyncpa [#allocation4], 1

</llo_original>
